<compile_context>
chip_gen: v5e
topology: v5e:2x2
jax: 0.10.0
libtpu: 0.0.40
codegen_flags: <defaults>
</compile_context>

<pallas_src>
import jax
import jax.numpy as jnp
from jax.experimental import pallas as pl
from jax.experimental.pallas import tpu as pltpu

KH = KW = 5
STRIDE = 2
PAD = 2
BN_EPS = 1e-5
LEAKY_SLOPE = 0.2


def _round_up(x, m):
    return (x + m - 1) // m * m


def _cdiv(a, b):
    return (a + b - 1) // b


def _make_kernel(tm, row_stride):
    # tap -> (weight row, phase index, flat shift)
    taps = [(kh * KW + kw, (kh % 2) * 2 + (kw % 2),
             (kh // 2) * row_stride + (kw // 2))
            for kh in range(KH) for kw in range(KW)]

    def kernel(pa_ref, pb_ref, w_ref, bias_ref, o_ref, acc_ref):
        # pa_ref:   (4, C, TM)    bf16  flattened stride-phase planes, this tile
        # pb_ref:   (4, C, HALO)  bf16  halo = start of the next tile
        # w_ref:    (25, OC, C)   bf16  per-tap weights, BN scale folded in
        # bias_ref: (OC, 1)       f32   folded conv-bias + BN shift
        # o_ref:    (OC, TM)      bf16  lane-dense output tile (flattened spatial)
        # acc_ref:  (OC, TM)      f32   accumulator scratch
        win = jnp.concatenate([pa_ref[...], pb_ref[...]], axis=-1)  # (4, C, TM+HALO)
        acc_ref[...] = jnp.zeros_like(acc_ref)
        for t, p, s in taps:
            acc_ref[...] += jnp.dot(w_ref[t], win[p, :, s:s + tm],
                                    preferred_element_type=jnp.float32)
        y = acc_ref[...] + bias_ref[...]
        # LeakyReLU(0.2): for 0 < slope < 1, max(y, slope*y) == leaky_relu(y).
        o_ref[...] = jnp.maximum(y, LEAKY_SLOPE * y).astype(o_ref.dtype)

    return kernel


@jax.jit
def conv2d_block(x_nchw, weight, bias, gamma, beta, running_mean, running_var):
    """conv5x5/s2/p2 + BatchNorm(eval) + LeakyReLU(0.2), fused in one Pallas kernel.

    x_nchw: (N, C, H, W) f32; weight: (OC, C, 5, 5); bias/gamma/beta/mean/var: (OC,)
    Returns (N, OC, OH, OW) bf16 (bf16 operands, f32 accumulation).
    """
    n, c, h, w = x_nchw.shape
    oc = weight.shape[0]
    oh = (h + 2 * PAD - KH) // STRIDE + 1
    ow = (w + 2 * PAD - KW) // STRIDE + 1

    # ---- static tiling geometry ---------------------------------------------
    L = ow + 2                           # flat row stride (2 dead cols per row)
    m_flat = oh * L                      # flattened output length incl. dead cols
    halo = _round_up(2 * L + 2, 128)     # max tap shift, lane-aligned

    tm_target = min(2048, _round_up(m_flat, 128))
    # keep a (4, C, TM) bf16 phase-window block at ~<=4 MiB
    vmem_cap_tm = max(128, ((4 * 2 ** 20) // (8 * c)) // 128 * 128)
    tm_target = min(tm_target, vmem_cap_tm)
    k_tiles = _cdiv(m_flat, max(tm_target, 128))
    if n == 1 and k_tiles == 1 and m_flat > 128:
        k_tiles = 2                      # >=2 parallel programs for megacore
    tm = _round_up(_cdiv(m_flat, k_tiles), halo)   # multiple of halo, >= halo
    n_m_tiles = _cdiv(m_flat, tm)
    m_out = n_m_tiles * tm
    ph_rows = oh + 3                     # output rows + 2 tap rows + 1 guard row
    plen = _round_up(max(ph_rows * L, m_out + halo), tm)

    compute_dtype = jnp.bfloat16

    # ---- stride-phase planes: (N, 4, C, plen) bf16 --------------------------
    hp2 = 2 * ph_rows
    wp2 = 2 * L
    xq = x_nchw.astype(compute_dtype)
    x_pad = jnp.pad(xq, ((0, 0), (0, 0),
                         (PAD, hp2 - h - PAD), (PAD, wp2 - w - PAD)))
    phases = jnp.stack([x_pad[:, :, a::2, b::2]
                        for a in (0, 1) for b in (0, 1)], axis=1)  # (N,4,C,ph_rows,L)
    planes = phases.reshape(n, 4, c, ph_rows * L)
    planes = jnp.pad(planes, ((0, 0), (0, 0), (0, 0), (0, plen - ph_rows * L)))

    # ---- fold conv bias + BatchNorm(eval) into per-tap weights / one bias ----
    scale = gamma / jnp.sqrt(running_var + BN_EPS)                      # (OC,)
    w_scaled = weight.astype(jnp.float32) * scale[:, None, None, None]  # (OC,C,5,5)
    w_taps = jnp.transpose(w_scaled, (2, 3, 0, 1)).reshape(KH * KW, oc, c)
    w_taps = w_taps.astype(compute_dtype)                               # (25, OC, C)
    fbias = ((bias - running_mean) * scale + beta).reshape(oc, 1)
    fbias = fbias.astype(jnp.float32)                                   # (OC, 1)

    # ---- VMEM budget (double-buffered blocks + scratch + window temporaries) -
    est = (2 * (4 * c * tm * 2) + 2 * (4 * c * halo * 2)     # pa, pb blocks
           + 2 * (KH * KW * oc * c * 2) + 2 * (oc * tm * 2)  # weights, out
           + oc * tm * 4                                     # acc scratch
           + 4 * c * (tm + halo) * 2 + 2 * c * tm * 2)       # win + tap temps
    vmem_limit = int(min(96 * 2 ** 20, max(32 * 2 ** 20, int(est * 1.5))))

    kernel = _make_kernel(tm, L)

    out = pl.pallas_call(
        kernel,
        out_shape=jax.ShapeDtypeStruct((n, oc, m_out), compute_dtype),
        grid_spec=pltpu.PrefetchScalarGridSpec(
            num_scalar_prefetch=0,
            grid=(n, n_m_tiles),
            in_specs=[
                # this tile of the flattened phase planes
                pl.BlockSpec((None, 4, c, tm), lambda b, i: (b, 0, 0, i)),
                # halo = first `halo` elements of the next tile (same array)
                pl.BlockSpec((None, 4, c, halo),
                             lambda b, i: (b, 0, 0, (i + 1) * (tm // halo))),
                # resident per-tap weights / bias
                pl.BlockSpec((KH * KW, oc, c), lambda b, i: (0, 0, 0)),
                pl.BlockSpec((oc, 1), lambda b, i: (0, 0)),
            ],
            out_specs=pl.BlockSpec((None, oc, tm), lambda b, i: (b, 0, i)),
            scratch_shapes=[pltpu.VMEM((oc, tm), jnp.float32)],
        ),
        compiler_params=pltpu.CompilerParams(
            dimension_semantics=("parallel", "parallel"),
            vmem_limit_bytes=vmem_limit,
        ),
    )(planes, planes, w_taps, fbias)

    # (N, OC, m_out) -> (N, OC, OH, OW): drop the M tail and the 2 dead
    # columns per row; already NCHW, no transpose needed.
    out = out[:, :, :m_flat].reshape(n, oc, oh, L)[:, :, :, :ow]
    return out


def _reference(x, weight, bias, gamma, beta, mean, var):
    y = jax.lax.conv_general_dilated(
        x, weight, window_strides=(STRIDE, STRIDE),
        padding=((PAD, PAD), (PAD, PAD)),
        dimension_numbers=("NCHW", "OIHW", "NCHW"),
        precision=jax.lax.Precision.HIGHEST)
    y = y + bias.reshape(1, -1, 1, 1)
    y = (y - mean.reshape(1, -1, 1, 1)) / jnp.sqrt(var.reshape(1, -1, 1, 1) + BN_EPS)
    y = y * gamma.reshape(1, -1, 1, 1) + beta.reshape(1, -1, 1, 1)
    return jnp.where(y > 0, y, LEAKY_SLOPE * y)


if __name__ == "__main__":
    key = jax.random.PRNGKey(0)
    k_x, k_w, k_b, k_g, k_be, k_m, k_v = jax.random.split(key, 7)

    N, C_IN, C_OUT, H, W = 2, 4, 8, 16, 16
    x = jax.random.normal(k_x, (N, C_IN, H, W), dtype=jnp.float32)

    fan_in = C_IN * KH * KW
    bound = 1.0 / (fan_in ** 0.5)
    weight = jax.random.uniform(k_w, (C_OUT, C_IN, KH, KW),
                                minval=-bound, maxval=bound, dtype=jnp.float32)
    bias = jax.random.uniform(k_b, (C_OUT,), minval=-bound, maxval=bound,
                              dtype=jnp.float32)
    gamma = jax.random.uniform(k_g, (C_OUT,), minval=0.5, maxval=1.5,
                               dtype=jnp.float32)
    beta = 0.1 * jax.random.normal(k_be, (C_OUT,), dtype=jnp.float32)
    running_mean = 0.1 * jax.random.normal(k_m, (C_OUT,), dtype=jnp.float32)
    running_var = jax.random.uniform(k_v, (C_OUT,), minval=0.5, maxval=1.5,
                                     dtype=jnp.float32)

    out = conv2d_block(x, weight, bias, gamma, beta, running_mean, running_var)
    out = jax.block_until_ready(out)

    # Kernel consumes bf16-rounded operands (f32 accumulation) and emits bf16;
    # compare against an f32 reference evaluated on the same bf16-rounded inputs.
    x_q = x.astype(jnp.bfloat16).astype(jnp.float32)
    w_q = weight.astype(jnp.bfloat16).astype(jnp.float32)
    ref = _reference(x_q, w_q, bias, gamma, beta, running_mean, running_var)

    out_f32 = out.astype(jnp.float32)
    assert out.shape == (N, C_OUT, 8, 8), out.shape
    max_err = float(jnp.max(jnp.abs(out_f32 - ref)))
    assert jnp.allclose(out_f32, ref, atol=3e-2, rtol=3e-2), (
        f"mismatch vs reference, max err {max_err}")

    print("KERNEL_OK")
</pallas_src>

<mosaic_0001>
module attributes {stable_mosaic.version = 11 : i64} {
  func.func @kernel(%arg0: i32, %arg1: i32, %arg2: memref<1x4x4x128xbf16, #tpu.memory_space<vmem>>, %arg3: memref<1x4x4x128xbf16, #tpu.memory_space<vmem>>, %arg4: memref<25x8x4xbf16, #tpu.memory_space<vmem>>, %arg5: memref<8x1xf32, #tpu.memory_space<vmem>>, %arg6: memref<1x8x128xbf16, #tpu.memory_space<vmem>>, %arg7: memref<8x128xf32, #tpu.memory_space<vmem>>) attributes {dimension_semantics = [#tpu.dimension_semantics<parallel>, #tpu.dimension_semantics<parallel>], iteration_bounds = array<i64: 2, 1>, scalar_prefetch = 0 : i64, scratch_operands = 1 : i64, tpu.core_type = #tpu.core_type<tc>, window_params = [{transform_indices = @transform_0, window_bounds = array<i64: 1, 4, 4, 128>}, {transform_indices = @transform_1, window_bounds = array<i64: 1, 4, 4, 128>}, {pipeline_mode = #tpu.pipeline_mode<synchronous>, transform_indices = @transform_2, window_bounds = array<i64: 25, 8, 4>}, {pipeline_mode = #tpu.pipeline_mode<synchronous>, transform_indices = @transform_3, window_bounds = array<i64: 8, 1>}, {transform_indices = @transform_4, window_bounds = array<i64: 1, 8, 128>}]} {
    %c0 = arith.constant 0 : index
    %c0_0 = arith.constant 0 : index
    %c0_1 = arith.constant 0 : index
    %c0_2 = arith.constant 0 : index
    %0 = vector.load %arg2[%c0, %c0_0, %c0_1, %c0_2] : memref<1x4x4x128xbf16, #tpu.memory_space<vmem>>, vector<1x4x4x128xbf16>
    %1 = vector.shape_cast %0 : vector<1x4x4x128xbf16> to vector<4x4x128xbf16>
    %c0_3 = arith.constant 0 : index
    %c0_4 = arith.constant 0 : index
    %c0_5 = arith.constant 0 : index
    %c0_6 = arith.constant 0 : index
    %2 = vector.load %arg3[%c0_3, %c0_4, %c0_5, %c0_6] : memref<1x4x4x128xbf16, #tpu.memory_space<vmem>>, vector<1x4x4x128xbf16>
    %3 = vector.shape_cast %2 : vector<1x4x4x128xbf16> to vector<4x4x128xbf16>
    %4 = tpu.concatenate %1, %3 in 2 : vector<4x4x128xbf16>, vector<4x4x128xbf16> -> vector<4x4x256xbf16>
    %cst = arith.constant 0.000000e+00 : f32
    %5 = vector.broadcast %cst : f32 to vector<8x128xf32>
    %c0_7 = arith.constant 0 : index
    %c0_8 = arith.constant 0 : index
    %6 = vector.load %arg7[%c0_7, %c0_8] : memref<8x128xf32, #tpu.memory_space<vmem>>, vector<8x128xf32>
    tpu.vector_store %arg7[%c0_7, %c0_8], %5 {strides = array<i32>} : memref<8x128xf32, #tpu.memory_space<vmem>>, vector<8x128xf32>,
    %c0_9 = arith.constant 0 : index
    %c0_10 = arith.constant 0 : index
    %7 = vector.load %arg7[%c0_9, %c0_10] : memref<8x128xf32, #tpu.memory_space<vmem>>, vector<8x128xf32>
    %c0_11 = arith.constant 0 : index
    %c0_12 = arith.constant 0 : index
    %c0_13 = arith.constant 0 : index
    %8 = vector.load %arg4[%c0_11, %c0_12, %c0_13] : memref<25x8x4xbf16, #tpu.memory_space<vmem>>, vector<1x8x4xbf16>
    %9 = vector.shape_cast %8 : vector<1x8x4xbf16> to vector<8x4xbf16>
    %10 = vector.extract_strided_slice %4 {offsets = [0, 0, 0], sizes = [1, 4, 128], strides = [1, 1, 1]} : vector<4x4x256xbf16> to vector<1x4x128xbf16>
    %11 = vector.shape_cast %10 : vector<1x4x128xbf16> to vector<4x128xbf16>
    %cst_14 = arith.constant dense<0.000000e+00> : vector<8x128xf32>
    %12 = tpu.matmul %9, %11, %cst_14 {dimension_numbers = #tpu.dot_dimension_numbers<[1], [0], [0], [1], [0, 0, 1, 1], [], []>} : vector<8x4xbf16>, vector<4x128xbf16>, vector<8x128xf32> -> vector<8x128xf32>
    %13 = arith.addf %7, %12 : vector<8x128xf32>
    %c0_15 = arith.constant 0 : index
    %c0_16 = arith.constant 0 : index
    %14 = vector.load %arg7[%c0_15, %c0_16] : memref<8x128xf32, #tpu.memory_space<vmem>>, vector<8x128xf32>
    tpu.vector_store %arg7[%c0_15, %c0_16], %13 {strides = array<i32>} : memref<8x128xf32, #tpu.memory_space<vmem>>, vector<8x128xf32>,
    %c0_17 = arith.constant 0 : index
    %c0_18 = arith.constant 0 : index
    %15 = vector.load %arg7[%c0_17, %c0_18] : memref<8x128xf32, #tpu.memory_space<vmem>>, vector<8x128xf32>
    %c1 = arith.constant 1 : index
    %c0_19 = arith.constant 0 : index
    %c0_20 = arith.constant 0 : index
    %16 = vector.load %arg4[%c1, %c0_19, %c0_20] : memref<25x8x4xbf16, #tpu.memory_space<vmem>>, vector<1x8x4xbf16>
    %17 = vector.shape_cast %16 : vector<1x8x4xbf16> to vector<8x4xbf16>
    %18 = vector.extract_strided_slice %4 {offsets = [1, 0, 0], sizes = [1, 4, 128], strides = [1, 1, 1]} : vector<4x4x256xbf16> to vector<1x4x128xbf16>
    %19 = vector.shape_cast %18 : vector<1x4x128xbf16> to vector<4x128xbf16>
    %cst_21 = arith.constant dense<0.000000e+00> : vector<8x128xf32>
    %20 = tpu.matmul %17, %19, %cst_21 {dimension_numbers = #tpu.dot_dimension_numbers<[1], [0], [0], [1], [0, 0, 1, 1], [], []>} : vector<8x4xbf16>, vector<4x128xbf16>, vector<8x128xf32> -> vector<8x128xf32>
    %21 = arith.addf %15, %20 : vector<8x128xf32>
    %c0_22 = arith.constant 0 : index
    %c0_23 = arith.constant 0 : index
    %22 = vector.load %arg7[%c0_22, %c0_23] : memref<8x128xf32, #tpu.memory_space<vmem>>, vector<8x128xf32>
    tpu.vector_store %arg7[%c0_22, %c0_23], %21 {strides = array<i32>} : memref<8x128xf32, #tpu.memory_space<vmem>>, vector<8x128xf32>,
    %c0_24 = arith.constant 0 : index
    %c0_25 = arith.constant 0 : index
    %23 = vector.load %arg7[%c0_24, %c0_25] : memref<8x128xf32, #tpu.memory_space<vmem>>, vector<8x128xf32>
    %c2 = arith.constant 2 : index
    %c0_26 = arith.constant 0 : index
    %c0_27 = arith.constant 0 : index
    %24 = vector.load %arg4[%c2, %c0_26, %c0_27] : memref<25x8x4xbf16, #tpu.memory_space<vmem>>, vector<1x8x4xbf16>
    %25 = vector.shape_cast %24 : vector<1x8x4xbf16> to vector<8x4xbf16>
    %26 = vector.extract_strided_slice %4 {offsets = [0, 0, 1], sizes = [1, 4, 128], strides = [1, 1, 1]} : vector<4x4x256xbf16> to vector<1x4x128xbf16>
    %27 = vector.shape_cast %26 : vector<1x4x128xbf16> to vector<4x128xbf16>
    %cst_28 = arith.constant dense<0.000000e+00> : vector<8x128xf32>
    %28 = tpu.matmul %25, %27, %cst_28 {dimension_numbers = #tpu.dot_dimension_numbers<[1], [0], [0], [1], [0, 0, 1, 1], [], []>} : vector<8x4xbf16>, vector<4x128xbf16>, vector<8x128xf32> -> vector<8x128xf32>
    %29 = arith.addf %23, %28 : vector<8x128xf32>
    %c0_29 = arith.constant 0 : index
    %c0_30 = arith.constant 0 : index
    %30 = vector.load %arg7[%c0_29, %c0_30] : memref<8x128xf32, #tpu.memory_space<vmem>>, vector<8x128xf32>
    tpu.vector_store %arg7[%c0_29, %c0_30], %29 {strides = array<i32>} : memref<8x128xf32, #tpu.memory_space<vmem>>, vector<8x128xf32>,
    %c0_31 = arith.constant 0 : index
    %c0_32 = arith.constant 0 : index
    %31 = vector.load %arg7[%c0_31, %c0_32] : memref<8x128xf32, #tpu.memory_space<vmem>>, vector<8x128xf32>
    %c3 = arith.constant 3 : index
    %c0_33 = arith.constant 0 : index
    %c0_34 = arith.constant 0 : index
    %32 = vector.load %arg4[%c3, %c0_33, %c0_34] : memref<25x8x4xbf16, #tpu.memory_space<vmem>>, vector<1x8x4xbf16>
    %33 = vector.shape_cast %32 : vector<1x8x4xbf16> to vector<8x4xbf16>
    %34 = vector.extract_strided_slice %4 {offsets = [1, 0, 1], sizes = [1, 4, 128], strides = [1, 1, 1]} : vector<4x4x256xbf16> to vector<1x4x128xbf16>
    %35 = vector.shape_cast %34 : vector<1x4x128xbf16> to vector<4x128xbf16>
    %cst_35 = arith.constant dense<0.000000e+00> : vector<8x128xf32>
    %36 = tpu.matmul %33, %35, %cst_35 {dimension_numbers = #tpu.dot_dimension_numbers<[1], [0], [0], [1], [0, 0, 1, 1], [], []>} : vector<8x4xbf16>, vector<4x128xbf16>, vector<8x128xf32> -> vector<8x128xf32>
    %37 = arith.addf %31, %36 : vector<8x128xf32>
    %c0_36 = arith.constant 0 : index
    %c0_37 = arith.constant 0 : index
    %38 = vector.load %arg7[%c0_36, %c0_37] : memref<8x128xf32, #tpu.memory_space<vmem>>, vector<8x128xf32>
    tpu.vector_store %arg7[%c0_36, %c0_37], %37 {strides = array<i32>} : memref<8x128xf32, #tpu.memory_space<vmem>>, vector<8x128xf32>,
    %c0_38 = arith.constant 0 : index
    %c0_39 = arith.constant 0 : index
    %39 = vector.load %arg7[%c0_38, %c0_39] : memref<8x128xf32, #tpu.memory_space<vmem>>, vector<8x128xf32>
    %c4 = arith.constant 4 : index
    %c0_40 = arith.constant 0 : index
    %c0_41 = arith.constant 0 : index
    %40 = vector.load %arg4[%c4, %c0_40, %c0_41] : memref<25x8x4xbf16, #tpu.memory_space<vmem>>, vector<1x8x4xbf16>
    %41 = vector.shape_cast %40 : vector<1x8x4xbf16> to vector<8x4xbf16>
    %42 = vector.extract_strided_slice %4 {offsets = [0, 0, 2], sizes = [1, 4, 128], strides = [1, 1, 1]} : vector<4x4x256xbf16> to vector<1x4x128xbf16>
    %43 = vector.shape_cast %42 : vector<1x4x128xbf16> to vector<4x128xbf16>
    %cst_42 = arith.constant dense<0.000000e+00> : vector<8x128xf32>
    %44 = tpu.matmul %41, %43, %cst_42 {dimension_numbers = #tpu.dot_dimension_numbers<[1], [0], [0], [1], [0, 0, 1, 1], [], []>} : vector<8x4xbf16>, vector<4x128xbf16>, vector<8x128xf32> -> vector<8x128xf32>
    %45 = arith.addf %39, %44 : vector<8x128xf32>
    %c0_43 = arith.constant 0 : index
    %c0_44 = arith.constant 0 : index
    %46 = vector.load %arg7[%c0_43, %c0_44] : memref<8x128xf32, #tpu.memory_space<vmem>>, vector<8x128xf32>
    tpu.vector_store %arg7[%c0_43, %c0_44], %45 {strides = array<i32>} : memref<8x128xf32, #tpu.memory_space<vmem>>, vector<8x128xf32>,
    %c0_45 = arith.constant 0 : index
    %c0_46 = arith.constant 0 : index
    %47 = vector.load %arg7[%c0_45, %c0_46] : memref<8x128xf32, #tpu.memory_space<vmem>>, vector<8x128xf32>
    %c5 = arith.constant 5 : index
    %c0_47 = arith.constant 0 : index
    %c0_48 = arith.constant 0 : index
    %48 = vector.load %arg4[%c5, %c0_47, %c0_48] : memref<25x8x4xbf16, #tpu.memory_space<vmem>>, vector<1x8x4xbf16>
    %49 = vector.shape_cast %48 : vector<1x8x4xbf16> to vector<8x4xbf16>
    %50 = vector.extract_strided_slice %4 {offsets = [2, 0, 0], sizes = [1, 4, 128], strides = [1, 1, 1]} : vector<4x4x256xbf16> to vector<1x4x128xbf16>
    %51 = vector.shape_cast %50 : vector<1x4x128xbf16> to vector<4x128xbf16>
    %cst_49 = arith.constant dense<0.000000e+00> : vector<8x128xf32>
    %52 = tpu.matmul %49, %51, %cst_49 {dimension_numbers = #tpu.dot_dimension_numbers<[1], [0], [0], [1], [0, 0, 1, 1], [], []>} : vector<8x4xbf16>, vector<4x128xbf16>, vector<8x128xf32> -> vector<8x128xf32>
    %53 = arith.addf %47, %52 : vector<8x128xf32>
    %c0_50 = arith.constant 0 : index
    %c0_51 = arith.constant 0 : index
    %54 = vector.load %arg7[%c0_50, %c0_51] : memref<8x128xf32, #tpu.memory_space<vmem>>, vector<8x128xf32>
    tpu.vector_store %arg7[%c0_50, %c0_51], %53 {strides = array<i32>} : memref<8x128xf32, #tpu.memory_space<vmem>>, vector<8x128xf32>,
    %c0_52 = arith.constant 0 : index
    %c0_53 = arith.constant 0 : index
    %55 = vector.load %arg7[%c0_52, %c0_53] : memref<8x128xf32, #tpu.memory_space<vmem>>, vector<8x128xf32>
    %c6 = arith.constant 6 : index
    %c0_54 = arith.constant 0 : index
    %c0_55 = arith.constant 0 : index
    %56 = vector.load %arg4[%c6, %c0_54, %c0_55] : memref<25x8x4xbf16, #tpu.memory_space<vmem>>, vector<1x8x4xbf16>
    %57 = vector.shape_cast %56 : vector<1x8x4xbf16> to vector<8x4xbf16>
    %58 = vector.extract_strided_slice %4 {offsets = [3, 0, 0], sizes = [1, 4, 128], strides = [1, 1, 1]} : vector<4x4x256xbf16> to vector<1x4x128xbf16>
    %59 = vector.shape_cast %58 : vector<1x4x128xbf16> to vector<4x128xbf16>
    %cst_56 = arith.constant dense<0.000000e+00> : vector<8x128xf32>
    %60 = tpu.matmul %57, %59, %cst_56 {dimension_numbers = #tpu.dot_dimension_numbers<[1], [0], [0], [1], [0, 0, 1, 1], [], []>} : vector<8x4xbf16>, vector<4x128xbf16>, vector<8x128xf32> -> vector<8x128xf32>
    %61 = arith.addf %55, %60 : vector<8x128xf32>
    %c0_57 = arith.constant 0 : index
    %c0_58 = arith.constant 0 : index
    %62 = vector.load %arg7[%c0_57, %c0_58] : memref<8x128xf32, #tpu.memory_space<vmem>>, vector<8x128xf32>
    tpu.vector_store %arg7[%c0_57, %c0_58], %61 {strides = array<i32>} : memref<8x128xf32, #tpu.memory_space<vmem>>, vector<8x128xf32>,
    %c0_59 = arith.constant 0 : index
    %c0_60 = arith.constant 0 : index
    %63 = vector.load %arg7[%c0_59, %c0_60] : memref<8x128xf32, #tpu.memory_space<vmem>>, vector<8x128xf32>
    %c7 = arith.constant 7 : index
    %c0_61 = arith.constant 0 : index
    %c0_62 = arith.constant 0 : index
    %64 = vector.load %arg4[%c7, %c0_61, %c0_62] : memref<25x8x4xbf16, #tpu.memory_space<vmem>>, vector<1x8x4xbf16>
    %65 = vector.shape_cast %64 : vector<1x8x4xbf16> to vector<8x4xbf16>
    %66 = vector.extract_strided_slice %4 {offsets = [2, 0, 1], sizes = [1, 4, 128], strides = [1, 1, 1]} : vector<4x4x256xbf16> to vector<1x4x128xbf16>
    %67 = vector.shape_cast %66 : vector<1x4x128xbf16> to vector<4x128xbf16>
    %cst_63 = arith.constant dense<0.000000e+00> : vector<8x128xf32>
    %68 = tpu.matmul %65, %67, %cst_63 {dimension_numbers = #tpu.dot_dimension_numbers<[1], [0], [0], [1], [0, 0, 1, 1], [], []>} : vector<8x4xbf16>, vector<4x128xbf16>, vector<8x128xf32> -> vector<8x128xf32>
    %69 = arith.addf %63, %68 : vector<8x128xf32>
    %c0_64 = arith.constant 0 : index
    %c0_65 = arith.constant 0 : index
    %70 = vector.load %arg7[%c0_64, %c0_65] : memref<8x128xf32, #tpu.memory_space<vmem>>, vector<8x128xf32>
    tpu.vector_store %arg7[%c0_64, %c0_65], %69 {strides = array<i32>} : memref<8x128xf32, #tpu.memory_space<vmem>>, vector<8x128xf32>,
    %c0_66 = arith.constant 0 : index
    %c0_67 = arith.constant 0 : index
    %71 = vector.load %arg7[%c0_66, %c0_67] : memref<8x128xf32, #tpu.memory_space<vmem>>, vector<8x128xf32>
    %c8 = arith.constant 8 : index
    %c0_68 = arith.constant 0 : index
    %c0_69 = arith.constant 0 : index
    %72 = vector.load %arg4[%c8, %c0_68, %c0_69] : memref<25x8x4xbf16, #tpu.memory_space<vmem>>, vector<1x8x4xbf16>
    %73 = vector.shape_cast %72 : vector<1x8x4xbf16> to vector<8x4xbf16>
    %74 = vector.extract_strided_slice %4 {offsets = [3, 0, 1], sizes = [1, 4, 128], strides = [1, 1, 1]} : vector<4x4x256xbf16> to vector<1x4x128xbf16>
    %75 = vector.shape_cast %74 : vector<1x4x128xbf16> to vector<4x128xbf16>
    %cst_70 = arith.constant dense<0.000000e+00> : vector<8x128xf32>
    %76 = tpu.matmul %73, %75, %cst_70 {dimension_numbers = #tpu.dot_dimension_numbers<[1], [0], [0], [1], [0, 0, 1, 1], [], []>} : vector<8x4xbf16>, vector<4x128xbf16>, vector<8x128xf32> -> vector<8x128xf32>
    %77 = arith.addf %71, %76 : vector<8x128xf32>
    %c0_71 = arith.constant 0 : index
    %c0_72 = arith.constant 0 : index
    %78 = vector.load %arg7[%c0_71, %c0_72] : memref<8x128xf32, #tpu.memory_space<vmem>>, vector<8x128xf32>
    tpu.vector_store %arg7[%c0_71, %c0_72], %77 {strides = array<i32>} : memref<8x128xf32, #tpu.memory_space<vmem>>, vector<8x128xf32>,
    %c0_73 = arith.constant 0 : index
    %c0_74 = arith.constant 0 : index
    %79 = vector.load %arg7[%c0_73, %c0_74] : memref<8x128xf32, #tpu.memory_space<vmem>>, vector<8x128xf32>
    %c9 = arith.constant 9 : index
    %c0_75 = arith.constant 0 : index
    %c0_76 = arith.constant 0 : index
    %80 = vector.load %arg4[%c9, %c0_75, %c0_76] : memref<25x8x4xbf16, #tpu.memory_space<vmem>>, vector<1x8x4xbf16>
    %81 = vector.shape_cast %80 : vector<1x8x4xbf16> to vector<8x4xbf16>
    %82 = vector.extract_strided_slice %4 {offsets = [2, 0, 2], sizes = [1, 4, 128], strides = [1, 1, 1]} : vector<4x4x256xbf16> to vector<1x4x128xbf16>
    %83 = vector.shape_cast %82 : vector<1x4x128xbf16> to vector<4x128xbf16>
    %cst_77 = arith.constant dense<0.000000e+00> : vector<8x128xf32>
    %84 = tpu.matmul %81, %83, %cst_77 {dimension_numbers = #tpu.dot_dimension_numbers<[1], [0], [0], [1], [0, 0, 1, 1], [], []>} : vector<8x4xbf16>, vector<4x128xbf16>, vector<8x128xf32> -> vector<8x128xf32>
    %85 = arith.addf %79, %84 : vector<8x128xf32>
    %c0_78 = arith.constant 0 : index
    %c0_79 = arith.constant 0 : index
    %86 = vector.load %arg7[%c0_78, %c0_79] : memref<8x128xf32, #tpu.memory_space<vmem>>, vector<8x128xf32>
    tpu.vector_store %arg7[%c0_78, %c0_79], %85 {strides = array<i32>} : memref<8x128xf32, #tpu.memory_space<vmem>>, vector<8x128xf32>,
    %c0_80 = arith.constant 0 : index
    %c0_81 = arith.constant 0 : index
    %87 = vector.load %arg7[%c0_80, %c0_81] : memref<8x128xf32, #tpu.memory_space<vmem>>, vector<8x128xf32>
    %c10 = arith.constant 10 : index
    %c0_82 = arith.constant 0 : index
    %c0_83 = arith.constant 0 : index
    %88 = vector.load %arg4[%c10, %c0_82, %c0_83] : memref<25x8x4xbf16, #tpu.memory_space<vmem>>, vector<1x8x4xbf16>
    %89 = vector.shape_cast %88 : vector<1x8x4xbf16> to vector<8x4xbf16>
    %90 = vector.extract_strided_slice %4 {offsets = [0, 0, 10], sizes = [1, 4, 128], strides = [1, 1, 1]} : vector<4x4x256xbf16> to vector<1x4x128xbf16>
    %91 = vector.shape_cast %90 : vector<1x4x128xbf16> to vector<4x128xbf16>
    %cst_84 = arith.constant dense<0.000000e+00> : vector<8x128xf32>
    %92 = tpu.matmul %89, %91, %cst_84 {dimension_numbers = #tpu.dot_dimension_numbers<[1], [0], [0], [1], [0, 0, 1, 1], [], []>} : vector<8x4xbf16>, vector<4x128xbf16>, vector<8x128xf32> -> vector<8x128xf32>
    %93 = arith.addf %87, %92 : vector<8x128xf32>
    %c0_85 = arith.constant 0 : index
    %c0_86 = arith.constant 0 : index
    %94 = vector.load %arg7[%c0_85, %c0_86] : memref<8x128xf32, #tpu.memory_space<vmem>>, vector<8x128xf32>
    tpu.vector_store %arg7[%c0_85, %c0_86], %93 {strides = array<i32>} : memref<8x128xf32, #tpu.memory_space<vmem>>, vector<8x128xf32>,
    %c0_87 = arith.constant 0 : index
    %c0_88 = arith.constant 0 : index
    %95 = vector.load %arg7[%c0_87, %c0_88] : memref<8x128xf32, #tpu.memory_space<vmem>>, vector<8x128xf32>
    %c11 = arith.constant 11 : index
    %c0_89 = arith.constant 0 : index
    %c0_90 = arith.constant 0 : index
    %96 = vector.load %arg4[%c11, %c0_89, %c0_90] : memref<25x8x4xbf16, #tpu.memory_space<vmem>>, vector<1x8x4xbf16>
    %97 = vector.shape_cast %96 : vector<1x8x4xbf16> to vector<8x4xbf16>
    %98 = vector.extract_strided_slice %4 {offsets = [1, 0, 10], sizes = [1, 4, 128], strides = [1, 1, 1]} : vector<4x4x256xbf16> to vector<1x4x128xbf16>
    %99 = vector.shape_cast %98 : vector<1x4x128xbf16> to vector<4x128xbf16>
    %cst_91 = arith.constant dense<0.000000e+00> : vector<8x128xf32>
    %100 = tpu.matmul %97, %99, %cst_91 {dimension_numbers = #tpu.dot_dimension_numbers<[1], [0], [0], [1], [0, 0, 1, 1], [], []>} : vector<8x4xbf16>, vector<4x128xbf16>, vector<8x128xf32> -> vector<8x128xf32>
    %101 = arith.addf %95, %100 : vector<8x128xf32>
    %c0_92 = arith.constant 0 : index
    %c0_93 = arith.constant 0 : index
    %102 = vector.load %arg7[%c0_92, %c0_93] : memref<8x128xf32, #tpu.memory_space<vmem>>, vector<8x128xf32>
    tpu.vector_store %arg7[%c0_92, %c0_93], %101 {strides = array<i32>} : memref<8x128xf32, #tpu.memory_space<vmem>>, vector<8x128xf32>,
    %c0_94 = arith.constant 0 : index
    %c0_95 = arith.constant 0 : index
    %103 = vector.load %arg7[%c0_94, %c0_95] : memref<8x128xf32, #tpu.memory_space<vmem>>, vector<8x128xf32>
    %c12 = arith.constant 12 : index
    %c0_96 = arith.constant 0 : index
    %c0_97 = arith.constant 0 : index
    %104 = vector.load %arg4[%c12, %c0_96, %c0_97] : memref<25x8x4xbf16, #tpu.memory_space<vmem>>, vector<1x8x4xbf16>
    %105 = vector.shape_cast %104 : vector<1x8x4xbf16> to vector<8x4xbf16>
    %106 = vector.extract_strided_slice %4 {offsets = [0, 0, 11], sizes = [1, 4, 128], strides = [1, 1, 1]} : vector<4x4x256xbf16> to vector<1x4x128xbf16>
    %107 = vector.shape_cast %106 : vector<1x4x128xbf16> to vector<4x128xbf16>
    %cst_98 = arith.constant dense<0.000000e+00> : vector<8x128xf32>
    %108 = tpu.matmul %105, %107, %cst_98 {dimension_numbers = #tpu.dot_dimension_numbers<[1], [0], [0], [1], [0, 0, 1, 1], [], []>} : vector<8x4xbf16>, vector<4x128xbf16>, vector<8x128xf32> -> vector<8x128xf32>
    %109 = arith.addf %103, %108 : vector<8x128xf32>
    %c0_99 = arith.constant 0 : index
    %c0_100 = arith.constant 0 : index
    %110 = vector.load %arg7[%c0_99, %c0_100] : memref<8x128xf32, #tpu.memory_space<vmem>>, vector<8x128xf32>
    tpu.vector_store %arg7[%c0_99, %c0_100], %109 {strides = array<i32>} : memref<8x128xf32, #tpu.memory_space<vmem>>, vector<8x128xf32>,
    %c0_101 = arith.constant 0 : index
    %c0_102 = arith.constant 0 : index
    %111 = vector.load %arg7[%c0_101, %c0_102] : memref<8x128xf32, #tpu.memory_space<vmem>>, vector<8x128xf32>
    %c13 = arith.constant 13 : index
    %c0_103 = arith.constant 0 : index
    %c0_104 = arith.constant 0 : index
    %112 = vector.load %arg4[%c13, %c0_103, %c0_104] : memref<25x8x4xbf16, #tpu.memory_space<vmem>>, vector<1x8x4xbf16>
    %113 = vector.shape_cast %112 : vector<1x8x4xbf16> to vector<8x4xbf16>
    %114 = vector.extract_strided_slice %4 {offsets = [1, 0, 11], sizes = [1, 4, 128], strides = [1, 1, 1]} : vector<4x4x256xbf16> to vector<1x4x128xbf16>
    %115 = vector.shape_cast %114 : vector<1x4x128xbf16> to vector<4x128xbf16>
    %cst_105 = arith.constant dense<0.000000e+00> : vector<8x128xf32>
    %116 = tpu.matmul %113, %115, %cst_105 {dimension_numbers = #tpu.dot_dimension_numbers<[1], [0], [0], [1], [0, 0, 1, 1], [], []>} : vector<8x4xbf16>, vector<4x128xbf16>, vector<8x128xf32> -> vector<8x128xf32>
    %117 = arith.addf %111, %116 : vector<8x128xf32>
    %c0_106 = arith.constant 0 : index
    %c0_107 = arith.constant 0 : index
    %118 = vector.load %arg7[%c0_106, %c0_107] : memref<8x128xf32, #tpu.memory_space<vmem>>, vector<8x128xf32>
    tpu.vector_store %arg7[%c0_106, %c0_107], %117 {strides = array<i32>} : memref<8x128xf32, #tpu.memory_space<vmem>>, vector<8x128xf32>,
    %c0_108 = arith.constant 0 : index
    %c0_109 = arith.constant 0 : index
    %119 = vector.load %arg7[%c0_108, %c0_109] : memref<8x128xf32, #tpu.memory_space<vmem>>, vector<8x128xf32>
    %c14 = arith.constant 14 : index
    %c0_110 = arith.constant 0 : index
    %c0_111 = arith.constant 0 : index
    %120 = vector.load %arg4[%c14, %c0_110, %c0_111] : memref<25x8x4xbf16, #tpu.memory_space<vmem>>, vector<1x8x4xbf16>
    %121 = vector.shape_cast %120 : vector<1x8x4xbf16> to vector<8x4xbf16>
    %122 = vector.extract_strided_slice %4 {offsets = [0, 0, 12], sizes = [1, 4, 128], strides = [1, 1, 1]} : vector<4x4x256xbf16> to vector<1x4x128xbf16>
    %123 = vector.shape_cast %122 : vector<1x4x128xbf16> to vector<4x128xbf16>
    %cst_112 = arith.constant dense<0.000000e+00> : vector<8x128xf32>
    %124 = tpu.matmul %121, %123, %cst_112 {dimension_numbers = #tpu.dot_dimension_numbers<[1], [0], [0], [1], [0, 0, 1, 1], [], []>} : vector<8x4xbf16>, vector<4x128xbf16>, vector<8x128xf32> -> vector<8x128xf32>
    %125 = arith.addf %119, %124 : vector<8x128xf32>
    %c0_113 = arith.constant 0 : index
    %c0_114 = arith.constant 0 : index
    %126 = vector.load %arg7[%c0_113, %c0_114] : memref<8x128xf32, #tpu.memory_space<vmem>>, vector<8x128xf32>
    tpu.vector_store %arg7[%c0_113, %c0_114], %125 {strides = array<i32>} : memref<8x128xf32, #tpu.memory_space<vmem>>, vector<8x128xf32>,
    %c0_115 = arith.constant 0 : index
    %c0_116 = arith.constant 0 : index
    %127 = vector.load %arg7[%c0_115, %c0_116] : memref<8x128xf32, #tpu.memory_space<vmem>>, vector<8x128xf32>
    %c15 = arith.constant 15 : index
    %c0_117 = arith.constant 0 : index
    %c0_118 = arith.constant 0 : index
    %128 = vector.load %arg4[%c15, %c0_117, %c0_118] : memref<25x8x4xbf16, #tpu.memory_space<vmem>>, vector<1x8x4xbf16>
    %129 = vector.shape_cast %128 : vector<1x8x4xbf16> to vector<8x4xbf16>
    %130 = vector.extract_strided_slice %4 {offsets = [2, 0, 10], sizes = [1, 4, 128], strides = [1, 1, 1]} : vector<4x4x256xbf16> to vector<1x4x128xbf16>
    %131 = vector.shape_cast %130 : vector<1x4x128xbf16> to vector<4x128xbf16>
    %cst_119 = arith.constant dense<0.000000e+00> : vector<8x128xf32>
    %132 = tpu.matmul %129, %131, %cst_119 {dimension_numbers = #tpu.dot_dimension_numbers<[1], [0], [0], [1], [0, 0, 1, 1], [], []>} : vector<8x4xbf16>, vector<4x128xbf16>, vector<8x128xf32> -> vector<8x128xf32>
    %133 = arith.addf %127, %132 : vector<8x128xf32>
    %c0_120 = arith.constant 0 : index
    %c0_121 = arith.constant 0 : index
    %134 = vector.load %arg7[%c0_120, %c0_121] : memref<8x128xf32, #tpu.memory_space<vmem>>, vector<8x128xf32>
    tpu.vector_store %arg7[%c0_120, %c0_121], %133 {strides = array<i32>} : memref<8x128xf32, #tpu.memory_space<vmem>>, vector<8x128xf32>,
    %c0_122 = arith.constant 0 : index
    %c0_123 = arith.constant 0 : index
    %135 = vector.load %arg7[%c0_122, %c0_123] : memref<8x128xf32, #tpu.memory_space<vmem>>, vector<8x128xf32>
    %c16 = arith.constant 16 : index
    %c0_124 = arith.constant 0 : index
    %c0_125 = arith.constant 0 : index
    %136 = vector.load %arg4[%c16, %c0_124, %c0_125] : memref<25x8x4xbf16, #tpu.memory_space<vmem>>, vector<1x8x4xbf16>
    %137 = vector.shape_cast %136 : vector<1x8x4xbf16> to vector<8x4xbf16>
    %138 = vector.extract_strided_slice %4 {offsets = [3, 0, 10], sizes = [1, 4, 128], strides = [1, 1, 1]} : vector<4x4x256xbf16> to vector<1x4x128xbf16>
    %139 = vector.shape_cast %138 : vector<1x4x128xbf16> to vector<4x128xbf16>
    %cst_126 = arith.constant dense<0.000000e+00> : vector<8x128xf32>
    %140 = tpu.matmul %137, %139, %cst_126 {dimension_numbers = #tpu.dot_dimension_numbers<[1], [0], [0], [1], [0, 0, 1, 1], [], []>} : vector<8x4xbf16>, vector<4x128xbf16>, vector<8x128xf32> -> vector<8x128xf32>
    %141 = arith.addf %135, %140 : vector<8x128xf32>
    %c0_127 = arith.constant 0 : index
    %c0_128 = arith.constant 0 : index
    %142 = vector.load %arg7[%c0_127, %c0_128] : memref<8x128xf32, #tpu.memory_space<vmem>>, vector<8x128xf32>
    tpu.vector_store %arg7[%c0_127, %c0_128], %141 {strides = array<i32>} : memref<8x128xf32, #tpu.memory_space<vmem>>, vector<8x128xf32>,
    %c0_129 = arith.constant 0 : index
    %c0_130 = arith.constant 0 : index
    %143 = vector.load %arg7[%c0_129, %c0_130] : memref<8x128xf32, #tpu.memory_space<vmem>>, vector<8x128xf32>
    %c17 = arith.constant 17 : index
    %c0_131 = arith.constant 0 : index
    %c0_132 = arith.constant 0 : index
    %144 = vector.load %arg4[%c17, %c0_131, %c0_132] : memref<25x8x4xbf16, #tpu.memory_space<vmem>>, vector<1x8x4xbf16>
    %145 = vector.shape_cast %144 : vector<1x8x4xbf16> to vector<8x4xbf16>
    %146 = vector.extract_strided_slice %4 {offsets = [2, 0, 11], sizes = [1, 4, 128], strides = [1, 1, 1]} : vector<4x4x256xbf16> to vector<1x4x128xbf16>
    %147 = vector.shape_cast %146 : vector<1x4x128xbf16> to vector<4x128xbf16>
    %cst_133 = arith.constant dense<0.000000e+00> : vector<8x128xf32>
    %148 = tpu.matmul %145, %147, %cst_133 {dimension_numbers = #tpu.dot_dimension_numbers<[1], [0], [0], [1], [0, 0, 1, 1], [], []>} : vector<8x4xbf16>, vector<4x128xbf16>, vector<8x128xf32> -> vector<8x128xf32>
    %149 = arith.addf %143, %148 : vector<8x128xf32>
    %c0_134 = arith.constant 0 : index
    %c0_135 = arith.constant 0 : index
    %150 = vector.load %arg7[%c0_134, %c0_135] : memref<8x128xf32, #tpu.memory_space<vmem>>, vector<8x128xf32>
    tpu.vector_store %arg7[%c0_134, %c0_135], %149 {strides = array<i32>} : memref<8x128xf32, #tpu.memory_space<vmem>>, vector<8x128xf32>,
    %c0_136 = arith.constant 0 : index
    %c0_137 = arith.constant 0 : index
    %151 = vector.load %arg7[%c0_136, %c0_137] : memref<8x128xf32, #tpu.memory_space<vmem>>, vector<8x128xf32>
    %c18 = arith.constant 18 : index
    %c0_138 = arith.constant 0 : index
    %c0_139 = arith.constant 0 : index
    %152 = vector.load %arg4[%c18, %c0_138, %c0_139] : memref<25x8x4xbf16, #tpu.memory_space<vmem>>, vector<1x8x4xbf16>
    %153 = vector.shape_cast %152 : vector<1x8x4xbf16> to vector<8x4xbf16>
    %154 = vector.extract_strided_slice %4 {offsets = [3, 0, 11], sizes = [1, 4, 128], strides = [1, 1, 1]} : vector<4x4x256xbf16> to vector<1x4x128xbf16>
    %155 = vector.shape_cast %154 : vector<1x4x128xbf16> to vector<4x128xbf16>
    %cst_140 = arith.constant dense<0.000000e+00> : vector<8x128xf32>
    %156 = tpu.matmul %153, %155, %cst_140 {dimension_numbers = #tpu.dot_dimension_numbers<[1], [0], [0], [1], [0, 0, 1, 1], [], []>} : vector<8x4xbf16>, vector<4x128xbf16>, vector<8x128xf32> -> vector<8x128xf32>
    %157 = arith.addf %151, %156 : vector<8x128xf32>
    %c0_141 = arith.constant 0 : index
    %c0_142 = arith.constant 0 : index
    %158 = vector.load %arg7[%c0_141, %c0_142] : memref<8x128xf32, #tpu.memory_space<vmem>>, vector<8x128xf32>
    tpu.vector_store %arg7[%c0_141, %c0_142], %157 {strides = array<i32>} : memref<8x128xf32, #tpu.memory_space<vmem>>, vector<8x128xf32>,
    %c0_143 = arith.constant 0 : index
    %c0_144 = arith.constant 0 : index
    %159 = vector.load %arg7[%c0_143, %c0_144] : memref<8x128xf32, #tpu.memory_space<vmem>>, vector<8x128xf32>
    %c19 = arith.constant 19 : index
    %c0_145 = arith.constant 0 : index
    %c0_146 = arith.constant 0 : index
    %160 = vector.load %arg4[%c19, %c0_145, %c0_146] : memref<25x8x4xbf16, #tpu.memory_space<vmem>>, vector<1x8x4xbf16>
    %161 = vector.shape_cast %160 : vector<1x8x4xbf16> to vector<8x4xbf16>
    %162 = vector.extract_strided_slice %4 {offsets = [2, 0, 12], sizes = [1, 4, 128], strides = [1, 1, 1]} : vector<4x4x256xbf16> to vector<1x4x128xbf16>
    %163 = vector.shape_cast %162 : vector<1x4x128xbf16> to vector<4x128xbf16>
    %cst_147 = arith.constant dense<0.000000e+00> : vector<8x128xf32>
    %164 = tpu.matmul %161, %163, %cst_147 {dimension_numbers = #tpu.dot_dimension_numbers<[1], [0], [0], [1], [0, 0, 1, 1], [], []>} : vector<8x4xbf16>, vector<4x128xbf16>, vector<8x128xf32> -> vector<8x128xf32>
    %165 = arith.addf %159, %164 : vector<8x128xf32>
    %c0_148 = arith.constant 0 : index
    %c0_149 = arith.constant 0 : index
    %166 = vector.load %arg7[%c0_148, %c0_149] : memref<8x128xf32, #tpu.memory_space<vmem>>, vector<8x128xf32>
    tpu.vector_store %arg7[%c0_148, %c0_149], %165 {strides = array<i32>} : memref<8x128xf32, #tpu.memory_space<vmem>>, vector<8x128xf32>,
    %c0_150 = arith.constant 0 : index
    %c0_151 = arith.constant 0 : index
    %167 = vector.load %arg7[%c0_150, %c0_151] : memref<8x128xf32, #tpu.memory_space<vmem>>, vector<8x128xf32>
    %c20 = arith.constant 20 : index
    %c0_152 = arith.constant 0 : index
    %c0_153 = arith.constant 0 : index
    %168 = vector.load %arg4[%c20, %c0_152, %c0_153] : memref<25x8x4xbf16, #tpu.memory_space<vmem>>, vector<1x8x4xbf16>
    %169 = vector.shape_cast %168 : vector<1x8x4xbf16> to vector<8x4xbf16>
    %170 = vector.extract_strided_slice %4 {offsets = [0, 0, 20], sizes = [1, 4, 128], strides = [1, 1, 1]} : vector<4x4x256xbf16> to vector<1x4x128xbf16>
    %171 = vector.shape_cast %170 : vector<1x4x128xbf16> to vector<4x128xbf16>
    %cst_154 = arith.constant dense<0.000000e+00> : vector<8x128xf32>
    %172 = tpu.matmul %169, %171, %cst_154 {dimension_numbers = #tpu.dot_dimension_numbers<[1], [0], [0], [1], [0, 0, 1, 1], [], []>} : vector<8x4xbf16>, vector<4x128xbf16>, vector<8x128xf32> -> vector<8x128xf32>
    %173 = arith.addf %167, %172 : vector<8x128xf32>
    %c0_155 = arith.constant 0 : index
    %c0_156 = arith.constant 0 : index
    %174 = vector.load %arg7[%c0_155, %c0_156] : memref<8x128xf32, #tpu.memory_space<vmem>>, vector<8x128xf32>
    tpu.vector_store %arg7[%c0_155, %c0_156], %173 {strides = array<i32>} : memref<8x128xf32, #tpu.memory_space<vmem>>, vector<8x128xf32>,
    %c0_157 = arith.constant 0 : index
    %c0_158 = arith.constant 0 : index
    %175 = vector.load %arg7[%c0_157, %c0_158] : memref<8x128xf32, #tpu.memory_space<vmem>>, vector<8x128xf32>
    %c21 = arith.constant 21 : index
    %c0_159 = arith.constant 0 : index
    %c0_160 = arith.constant 0 : index
    %176 = vector.load %arg4[%c21, %c0_159, %c0_160] : memref<25x8x4xbf16, #tpu.memory_space<vmem>>, vector<1x8x4xbf16>
    %177 = vector.shape_cast %176 : vector<1x8x4xbf16> to vector<8x4xbf16>
    %178 = vector.extract_strided_slice %4 {offsets = [1, 0, 20], sizes = [1, 4, 128], strides = [1, 1, 1]} : vector<4x4x256xbf16> to vector<1x4x128xbf16>
    %179 = vector.shape_cast %178 : vector<1x4x128xbf16> to vector<4x128xbf16>
    %cst_161 = arith.constant dense<0.000000e+00> : vector<8x128xf32>
    %180 = tpu.matmul %177, %179, %cst_161 {dimension_numbers = #tpu.dot_dimension_numbers<[1], [0], [0], [1], [0, 0, 1, 1], [], []>} : vector<8x4xbf16>, vector<4x128xbf16>, vector<8x128xf32> -> vector<8x128xf32>
    %181 = arith.addf %175, %180 : vector<8x128xf32>
    %c0_162 = arith.constant 0 : index
    %c0_163 = arith.constant 0 : index
    %182 = vector.load %arg7[%c0_162, %c0_163] : memref<8x128xf32, #tpu.memory_space<vmem>>, vector<8x128xf32>
    tpu.vector_store %arg7[%c0_162, %c0_163], %181 {strides = array<i32>} : memref<8x128xf32, #tpu.memory_space<vmem>>, vector<8x128xf32>,
    %c0_164 = arith.constant 0 : index
    %c0_165 = arith.constant 0 : index
    %183 = vector.load %arg7[%c0_164, %c0_165] : memref<8x128xf32, #tpu.memory_space<vmem>>, vector<8x128xf32>
    %c22 = arith.constant 22 : index
    %c0_166 = arith.constant 0 : index
    %c0_167 = arith.constant 0 : index
    %184 = vector.load %arg4[%c22, %c0_166, %c0_167] : memref<25x8x4xbf16, #tpu.memory_space<vmem>>, vector<1x8x4xbf16>
    %185 = vector.shape_cast %184 : vector<1x8x4xbf16> to vector<8x4xbf16>
    %186 = vector.extract_strided_slice %4 {offsets = [0, 0, 21], sizes = [1, 4, 128], strides = [1, 1, 1]} : vector<4x4x256xbf16> to vector<1x4x128xbf16>
    %187 = vector.shape_cast %186 : vector<1x4x128xbf16> to vector<4x128xbf16>
    %cst_168 = arith.constant dense<0.000000e+00> : vector<8x128xf32>
    %188 = tpu.matmul %185, %187, %cst_168 {dimension_numbers = #tpu.dot_dimension_numbers<[1], [0], [0], [1], [0, 0, 1, 1], [], []>} : vector<8x4xbf16>, vector<4x128xbf16>, vector<8x128xf32> -> vector<8x128xf32>
    %189 = arith.addf %183, %188 : vector<8x128xf32>
    %c0_169 = arith.constant 0 : index
    %c0_170 = arith.constant 0 : index
    %190 = vector.load %arg7[%c0_169, %c0_170] : memref<8x128xf32, #tpu.memory_space<vmem>>, vector<8x128xf32>
    tpu.vector_store %arg7[%c0_169, %c0_170], %189 {strides = array<i32>} : memref<8x128xf32, #tpu.memory_space<vmem>>, vector<8x128xf32>,
    %c0_171 = arith.constant 0 : index
    %c0_172 = arith.constant 0 : index
    %191 = vector.load %arg7[%c0_171, %c0_172] : memref<8x128xf32, #tpu.memory_space<vmem>>, vector<8x128xf32>
    %c23 = arith.constant 23 : index
    %c0_173 = arith.constant 0 : index
    %c0_174 = arith.constant 0 : index
    %192 = vector.load %arg4[%c23, %c0_173, %c0_174] : memref<25x8x4xbf16, #tpu.memory_space<vmem>>, vector<1x8x4xbf16>
    %193 = vector.shape_cast %192 : vector<1x8x4xbf16> to vector<8x4xbf16>
    %194 = vector.extract_strided_slice %4 {offsets = [1, 0, 21], sizes = [1, 4, 128], strides = [1, 1, 1]} : vector<4x4x256xbf16> to vector<1x4x128xbf16>
    %195 = vector.shape_cast %194 : vector<1x4x128xbf16> to vector<4x128xbf16>
    %cst_175 = arith.constant dense<0.000000e+00> : vector<8x128xf32>
    %196 = tpu.matmul %193, %195, %cst_175 {dimension_numbers = #tpu.dot_dimension_numbers<[1], [0], [0], [1], [0, 0, 1, 1], [], []>} : vector<8x4xbf16>, vector<4x128xbf16>, vector<8x128xf32> -> vector<8x128xf32>
    %197 = arith.addf %191, %196 : vector<8x128xf32>
    %c0_176 = arith.constant 0 : index
    %c0_177 = arith.constant 0 : index
    %198 = vector.load %arg7[%c0_176, %c0_177] : memref<8x128xf32, #tpu.memory_space<vmem>>, vector<8x128xf32>
    tpu.vector_store %arg7[%c0_176, %c0_177], %197 {strides = array<i32>} : memref<8x128xf32, #tpu.memory_space<vmem>>, vector<8x128xf32>,
    %c0_178 = arith.constant 0 : index
    %c0_179 = arith.constant 0 : index
    %199 = vector.load %arg7[%c0_178, %c0_179] : memref<8x128xf32, #tpu.memory_space<vmem>>, vector<8x128xf32>
    %c24 = arith.constant 24 : index
    %c0_180 = arith.constant 0 : index
    %c0_181 = arith.constant 0 : index
    %200 = vector.load %arg4[%c24, %c0_180, %c0_181] : memref<25x8x4xbf16, #tpu.memory_space<vmem>>, vector<1x8x4xbf16>
    %201 = vector.shape_cast %200 : vector<1x8x4xbf16> to vector<8x4xbf16>
    %202 = vector.extract_strided_slice %4 {offsets = [0, 0, 22], sizes = [1, 4, 128], strides = [1, 1, 1]} : vector<4x4x256xbf16> to vector<1x4x128xbf16>
    %203 = vector.shape_cast %202 : vector<1x4x128xbf16> to vector<4x128xbf16>
    %cst_182 = arith.constant dense<0.000000e+00> : vector<8x128xf32>
    %204 = tpu.matmul %201, %203, %cst_182 {dimension_numbers = #tpu.dot_dimension_numbers<[1], [0], [0], [1], [0, 0, 1, 1], [], []>} : vector<8x4xbf16>, vector<4x128xbf16>, vector<8x128xf32> -> vector<8x128xf32>
    %205 = arith.addf %199, %204 : vector<8x128xf32>
    %c0_183 = arith.constant 0 : index
    %c0_184 = arith.constant 0 : index
    %206 = vector.load %arg7[%c0_183, %c0_184] : memref<8x128xf32, #tpu.memory_space<vmem>>, vector<8x128xf32>
    tpu.vector_store %arg7[%c0_183, %c0_184], %205 {strides = array<i32>} : memref<8x128xf32, #tpu.memory_space<vmem>>, vector<8x128xf32>,
    %c0_185 = arith.constant 0 : index
    %c0_186 = arith.constant 0 : index
    %207 = vector.load %arg7[%c0_185, %c0_186] : memref<8x128xf32, #tpu.memory_space<vmem>>, vector<8x128xf32>
    %c0_187 = arith.constant 0 : index
    %c0_188 = arith.constant 0 : index
    %208 = vector.load %arg5[%c0_187, %c0_188] : memref<8x1xf32, #tpu.memory_space<vmem>>, vector<8x1xf32>
    %209 = vector.broadcast %208 : vector<8x1xf32> to vector<8x128xf32>
    %210 = arith.addf %207, %209 : vector<8x128xf32>
    %cst_189 = arith.constant 2.000000e-01 : f32
    %211 = vector.broadcast %cst_189 : f32 to vector<8x128xf32>
    %212 = arith.mulf %211, %210 : vector<8x128xf32>
    %213 = arith.maximumf %210, %212 : vector<8x128xf32>
    %214 = arith.truncf %213 : vector<8x128xf32> to vector<8x128xbf16>
    %c0_190 = arith.constant 0 : index
    %c0_191 = arith.constant 0 : index
    %c0_192 = arith.constant 0 : index
    %215 = vector.load %arg6[%c0_190, %c0_191, %c0_192] : memref<1x8x128xbf16, #tpu.memory_space<vmem>>, vector<1x8x128xbf16>
    %216 = vector.shape_cast %215 : vector<1x8x128xbf16> to vector<8x128xbf16>
    %217 = vector.shape_cast %214 : vector<8x128xbf16> to vector<1x8x128xbf16>
    tpu.vector_store %arg6[%c0_190, %c0_191, %c0_192], %217 {strides = array<i32>} : memref<1x8x128xbf16, #tpu.memory_space<vmem>>, vector<1x8x128xbf16>,
    return
  }
  func.func @transform_0(%arg0: i32, %arg1: i32) -> (i32, i32, i32, i32) {
    %c0_i32 = arith.constant 0 : i32
    %c0_i32_0 = arith.constant 0 : i32
    %c0_i32_1 = arith.constant 0 : i32
    return %arg0, %c0_i32, %c0_i32_0, %arg1 : i32, i32, i32, i32
  }
  func.func @transform_1(%arg0: i32, %arg1: i32) -> (i32, i32, i32, i32) {
    %c1_i32 = arith.constant 1 : i32
    %0 = arith.addi %arg1, %c1_i32 : i32
    %c1_i32_0 = arith.constant 1 : i32
    %1 = arith.muli %0, %c1_i32_0 : i32
    %c0_i32 = arith.constant 0 : i32
    %c0_i32_1 = arith.constant 0 : i32
    %c0_i32_2 = arith.constant 0 : i32
    return %arg0, %c0_i32, %c0_i32_1, %1 : i32, i32, i32, i32
  }
  func.func @transform_2(%arg0: i32, %arg1: i32) -> (i32, i32, i32) {
    %c0_i32 = arith.constant 0 : i32
    %c0_i32_0 = arith.constant 0 : i32
    %c0_i32_1 = arith.constant 0 : i32
    %c0_i32_2 = arith.constant 0 : i32
    return %c0_i32, %c0_i32_0, %c0_i32_1 : i32, i32, i32
  }
  func.func @transform_3(%arg0: i32, %arg1: i32) -> (i32, i32) {
    %c0_i32 = arith.constant 0 : i32
    %c0_i32_0 = arith.constant 0 : i32
    %c0_i32_1 = arith.constant 0 : i32
    return %c0_i32, %c0_i32_0 : i32, i32
  }
  func.func @transform_4(%arg0: i32, %arg1: i32) -> (i32, i32, i32) {
    %c0_i32 = arith.constant 0 : i32
    %c0_i32_0 = arith.constant 0 : i32
    return %arg0, %c0_i32, %arg1 : i32, i32, i32
  }
}

</mosaic_0001>

<llo_original>
// kernel: conv2d_block.1
$region0: #{conv2d_block.1}
  #allocation0 [shape = 'u32[]', space=smem, size = 0x4, offset = 0x4, fixed_abs, tag = 'smem constant byte address 0x4 - core index']
  #allocation1 [shape = 'u32[72,128]{1,0:T(1,128)}', space=vmem, size = 0x9000, scoped, tag = 'internal scratch']
  #allocation2 [shape = 'f32[8,128]{1,0:T(8,128)}', space=vmem, size = 0x1000, scoped, tag = 'scratch operand']
  %s0 = inlined_call_operand.vmem [shape: bf16[2,4,4,256], index: 0, kind: input, shape index: {}, may-alias: {0,1}]
  %s1 = inlined_call_operand.vmem [shape: bf16[2,4,4,256], index: 1, kind: input, shape index: {}, may-alias: {0,1}]
  %s2 = inlined_call_operand.vmem [shape: bf16[25,8,4], index: 2, kind: input, shape index: {}]
  %s3 = inlined_call_operand.vmem [shape: f32[8,1], index: 3, kind: input, shape index: {}]
  %s4 = inlined_call_operand.vmem [shape: bf16[2,8,128], index: 4, kind: output, shape index: {}]
  %s5 = sld [smem:[#allocation0]]
  $region131: #{conv2d_block.1} parent=0
    _
  %s7 = ssub.s32 1, %s5
  %s8 = scalar_select 0, %s7, %s5
  $region1: #{conv2d_block.1} parent=0
    #allocation3 [shape = 'u8[8192]{0}', space=vmem, size = 0x2000, scoped, tag = 'input window, operand 0']
    #allocation4 [shape = 'u8[8192]{0}', space=vmem, size = 0x2000, scoped, tag = 'input window, operand 1']
    loop: start=0, step=1, limit=4
    $region2: #{conv2d_block.1} parent=1 // loop_pre_header
      _
    $region3: #{conv2d_block.1} parent=1 // loop_header
      %s10 = sphi 0, %s14
      %p11 = scmp.ge.s32.totalorder %s10, 4
      %s17 = sphi 0, %s29
      %s18 = sphi 0, %s25
      %s19 = sphi 0, %s17
      %s20 = sphi 0, %s18
      %s21 = sphi 0, %s19
      %s22 = sphi 0, %s20
      %s34 = sphi 0, %s36
      %s37 = sphi 0, %s34
      %s38 = sphi 0, %s37
      %s54 = sphi 0, %s38
      %s64 = sphi 0, %s66
      %s67 = sphi 0, %s64
      %s68 = sphi 0, %s67
      %s84 = sphi 0, %s68
      %s88 = sphi 0, %s88
      %s90 = sphi 0, %s88
      %s91 = sphi 0, %s90
      %s105 = sphi 0, %s91
      %s109 = sphi 0, %s109
      %s111 = sphi 0, %s109
      %s112 = sphi 0, %s111
      %s126 = sphi 0, %s112
      %s134 = sphi 0, %s136
      %s137 = sphi 0, %s134
      %s138 = sphi 0, %s137
      %s154 = sphi 0, %s138
    $region4: #{conv2d_block.1} parent=1 // loop_header_branch
      %13 = sbr.rel (%p11) target = $region8
    $region5: #{conv2d_block.1} parent=1 // loop_body
      %s15 = ssub.s32 %s10, 1
      %s16 = ssub.s32 %s10, 2
      %s23 = sadd.s32 1, %s18
      %p24 = scmp.ge.s32.totalorder %s23, 1
      %s25 = scalar_select %p24, 0, %s23
      %s26 = sadd.s32 1, %s17
      %s27 = scalar_select %p24, %s26, %s17
      %p28 = scmp.ge.s32.totalorder %s27, 2
      %s29 = scalar_select %p28, 0, %s27
      %s30 = ssub.s32 %s17, %s29
      %s31 = ssub.s32 %s18, %s25
      %s32 = sor.u32 %s30, %s31
      %p33 = scmp.eq.s32.totalorder %s32, 0
      %s35 = sadd.s32 %s34, 1
      %s36 = scalar_select %p33, %s34, %s35
      %p39 = pneg %p33
      %p40 = scmp.eq.s32.totalorder %s10, 1
      %p41 = por %p39, %p40
      %p42 = scmp.ne.s32.totalorder %s34, %s37
      %p43 = scmp.eq.s32.totalorder %s10, 0
      %p44 = por %p42, %p43
      %p45 = scmp.ne.s32.totalorder %s34, %s37
      %p46 = scmp.eq.s32.totalorder %s15, 1
      %p47 = por %p45, %p46
      %p48 = scmp.ne.s32.totalorder %s37, %s38
      %p49 = scmp.eq.s32.totalorder %s15, 0
      %p50 = por %p48, %p49
      %p51 = scmp.ne.s32.totalorder %s37, %s38
      %p52 = scmp.eq.s32.totalorder %s16, 1
      %p53 = por %p51, %p52
      %p55 = scmp.ne.s32.totalorder %s38, %s54
      %p56 = scmp.eq.s32.totalorder %s16, 0
      %p57 = por %p55, %p56
      %s58 = sadd.s32 %s18, 1
      %s59 = sadd.s32 %s25, 1
      %s60 = ssub.s32 %s17, %s29
      %s61 = ssub.s32 %s58, %s59
      %s62 = sor.u32 %s60, %s61
      %p63 = scmp.eq.s32.totalorder %s62, 0
      %s65 = sadd.s32 %s64, 1
      %s66 = scalar_select %p63, %s64, %s65
      %p69 = pneg %p63
      %p70 = scmp.eq.s32.totalorder %s10, 1
      %p71 = por %p69, %p70
      %p72 = scmp.ne.s32.totalorder %s64, %s67
      %p73 = scmp.eq.s32.totalorder %s10, 0
      %p74 = por %p72, %p73
      %p75 = scmp.ne.s32.totalorder %s64, %s67
      %p76 = scmp.eq.s32.totalorder %s15, 1
      %p77 = por %p75, %p76
      %p78 = scmp.ne.s32.totalorder %s67, %s68
      %p79 = scmp.eq.s32.totalorder %s15, 0
      %p80 = por %p78, %p79
      %p81 = scmp.ne.s32.totalorder %s67, %s68
      %p82 = scmp.eq.s32.totalorder %s16, 1
      %p83 = por %p81, %p82
      %p85 = scmp.ne.s32.totalorder %s68, %s84
      %p86 = scmp.eq.s32.totalorder %s16, 0
      %p87 = por %p85, %p86
      %s89 = sadd.s32 %s88, 1
      %p92 = scmp.eq.s32.totalorder %s10, 1
      %p93 = scmp.ne.s32.totalorder %s88, %s90
      %p94 = scmp.eq.s32.totalorder %s10, 0
      %p95 = por %p93, %p94
      %p96 = scmp.ne.s32.totalorder %s88, %s90
      %p97 = scmp.eq.s32.totalorder %s15, 1
      %p98 = por %p96, %p97
      %p99 = scmp.ne.s32.totalorder %s90, %s91
      %p100 = scmp.eq.s32.totalorder %s15, 0
      %p101 = por %p99, %p100
      %p102 = scmp.ne.s32.totalorder %s90, %s91
      %p103 = scmp.eq.s32.totalorder %s16, 1
      %p104 = por %p102, %p103
      %p106 = scmp.ne.s32.totalorder %s91, %s105
      %p107 = scmp.eq.s32.totalorder %s16, 0
      %p108 = por %p106, %p107
      %s110 = sadd.s32 %s109, 1
      %p113 = scmp.eq.s32.totalorder %s10, 1
      %p114 = scmp.ne.s32.totalorder %s109, %s111
      %p115 = scmp.eq.s32.totalorder %s10, 0
      %p116 = por %p114, %p115
      %p117 = scmp.ne.s32.totalorder %s109, %s111
      %p118 = scmp.eq.s32.totalorder %s15, 1
      %p119 = por %p117, %p118
      %p120 = scmp.ne.s32.totalorder %s111, %s112
      %p121 = scmp.eq.s32.totalorder %s15, 0
      %p122 = por %p120, %p121
      %p123 = scmp.ne.s32.totalorder %s111, %s112
      %p124 = scmp.eq.s32.totalorder %s16, 1
      %p125 = por %p123, %p124
      %p127 = scmp.ne.s32.totalorder %s112, %s126
      %p128 = scmp.eq.s32.totalorder %s16, 0
      %p129 = por %p127, %p128
      %s130 = ssub.s32 %s17, %s29
      %s131 = ssub.s32 %s18, %s25
      %s132 = sor.u32 %s130, %s131
      %p133 = scmp.eq.s32.totalorder %s132, 0
      %s135 = sadd.s32 %s134, 1
      %s136 = scalar_select %p133, %s134, %s135
      %p139 = pneg %p133
      %p140 = scmp.eq.s32.totalorder %s10, 1
      %p141 = por %p139, %p140
      %p142 = scmp.ne.s32.totalorder %s134, %s137
      %p143 = scmp.eq.s32.totalorder %s10, 0
      %p144 = por %p142, %p143
      %p145 = scmp.ne.s32.totalorder %s134, %s137
      %p146 = scmp.eq.s32.totalorder %s15, 1
      %p147 = por %p145, %p146
      %p148 = scmp.ne.s32.totalorder %s137, %s138
      %p149 = scmp.eq.s32.totalorder %s15, 0
      %p150 = por %p148, %p149
      %p151 = scmp.ne.s32.totalorder %s137, %s138
      %p152 = scmp.eq.s32.totalorder %s16, 1
      %p153 = por %p151, %p152
      %p155 = scmp.ne.s32.totalorder %s138, %s154
      %p156 = scmp.eq.s32.totalorder %s16, 0
      %p157 = por %p155, %p156
      %p158 = scmp.le.s32.totalorder 1, %s10
      %p159 = scmp.lt.s32.totalorder %s10, 3
      %p160 = pnand %p158, %p159
      %p161 = pneg %p160
      // Predicated region
      $region9: #{conv2d_block.1} parent=5 // pred_check
        _
      $region10: #{conv2d_block.1} parent=5 // pred_check_branch
        %163 = sbr.rel (%p160) target = $region12
      $region11: #{conv2d_block.1} parent=5 // pred_region
        %s164 = ssub.s32 %s10, 1
        // Predicated region
        $region13: #{conv2d_block.1} parent=11 // pred_check
          %p165 = pneg %p101
        $region14: #{conv2d_block.1} parent=11 // pred_check_branch
          %167 = sbr.rel (%p165) target = $region16
        $region15: #{conv2d_block.1} parent=11 // pred_region
          _
        $region16: #{conv2d_block.1} parent=11 // pred_fallthru
          _
        // Predicated region
        $region17: #{conv2d_block.1} parent=11 // pred_check
          %p168 = pneg %p122
        $region18: #{conv2d_block.1} parent=11 // pred_check_branch
          %170 = sbr.rel (%p168) target = $region20
        $region19: #{conv2d_block.1} parent=11 // pred_region
          _
        $region20: #{conv2d_block.1} parent=11 // pred_fallthru
          _
      $region12: #{conv2d_block.1} parent=5 // pred_fallthru
        _
      %p171 = scmp.lt.s32.totalorder %s10, 2
      // Predicated region
      $region21: #{conv2d_block.1} parent=5 // pred_check
        %p172 = pneg %p171
      $region22: #{conv2d_block.1} parent=5 // pred_check_branch
        %174 = sbr.rel (%p172) target = $region24
      $region23: #{conv2d_block.1} parent=5 // pred_region
        // Predicated region
        $region25: #{conv2d_block.1} parent=23 // pred_check
          %p175 = pneg %p44
        $region26: #{conv2d_block.1} parent=23 // pred_check_branch
          %177 = sbr.rel (%p175) target = $region28
        $region27: #{conv2d_block.1} parent=23 // pred_region
          %s178 = sand.u32 %s34, 1
          %s179 = sand.u32 %s34, 1
          %s180 = smul.addr %s179, 8
          %s181 = scalar_lea.vmem [#allocation3], %s180
          %s182 = smul.addr %s17, 8
          %s183 = sadd.s32 %s18, %s182
          %s184 = smul.addr %s183, 2
          %s185 = scalar_lea.vmem %s0, %s184
          // Predicated region
          $region29: #{conv2d_block.1} parent=27 // pred_check
            _
          $region30: #{conv2d_block.1} parent=27 // pred_check_branch
            %187 = sbr.rel (0) target = $region32
          $region31: #{conv2d_block.1} parent=27 // pred_region
            // Predicated region
            $region33: #{conv2d_block.1} parent=31 // pred_check
              _
            $region34: #{conv2d_block.1} parent=31 // pred_check_branch
              %189 = sbr.rel target = $region36
            $region35: #{conv2d_block.1} parent=31 // pred_region
              // Predicated region
              $region48: #{conv2d_block.1} parent=35 // pred_check
                _
              $region49: #{conv2d_block.1} parent=35 // pred_check_branch
                %211 = sbr.rel (0) target = $region51
              $region50: #{conv2d_block.1} parent=35 // pred_region
                loop: start=0, step=1, limit=1
                $region52: #{conv2d_block.1} parent=50 // loop_pre_header
                  _
                $region53: #{conv2d_block.1} parent=50 // loop_header
                  %s213 = sphi 0, %s217
                  %p214 = scmp.ge.s32.totalorder %s213, 1
                  %s218 = sphi %s185, %s185
                  %s219 = sphi %s181, %s181
                $region54: #{conv2d_block.1} parent=50 // loop_header_branch
                  %216 = sbr.rel (%p214) target = $region58
                $region55: #{conv2d_block.1} parent=50 // loop_body
                  _
                $region56: #{conv2d_block.1} parent=50 // loop_footer
                  %s217 = sadd.s32 1, %s213
                $region57: #{conv2d_block.1} parent=50 // loop_footer_branch
                  %212 = sbr.rel target = $region53
                $region58: #{conv2d_block.1} parent=50 // loop_exit
                  _
                %s221 = ssub.s32 4, 1
                loop: start=0, step=1, limit=1
                $region59: #{conv2d_block.1} parent=50 // loop_pre_header
                  _
                $region60: #{conv2d_block.1} parent=50 // loop_header
                  %s223 = sphi 0, %s227
                  %p224 = scmp.ge.s32.totalorder %s223, 1
                  %s228 = sphi %s185, %s185
                  %s229 = sphi %s181, %s181
                $region61: #{conv2d_block.1} parent=50 // loop_header_branch
                  %226 = sbr.rel (%p224) target = $region65
                $region62: #{conv2d_block.1} parent=50 // loop_body
                  %v230 = vld [vmem:[%s228] sm:%s221]
                  %231 = vst [vmem:[%s229] sm:%s221] %v230
                  %v232 = vld [vmem:[%s228 + $0x4] sm:%s221]
                  %233 = vst [vmem:[%s229 + $0x2] sm:%s221] %v232
                  %v234 = vld [vmem:[%s228 + $0x8] sm:%s221]
                  %235 = vst [vmem:[%s229 + $0x4] sm:%s221] %v234
                  %v236 = vld [vmem:[%s228 + $0xc] sm:%s221]
                  %237 = vst [vmem:[%s229 + $0x6] sm:%s221] %v236
                $region63: #{conv2d_block.1} parent=50 // loop_footer
                  %s227 = sadd.s32 1, %s223
                $region64: #{conv2d_block.1} parent=50 // loop_footer_branch
                  %222 = sbr.rel target = $region60
                $region65: #{conv2d_block.1} parent=50 // loop_exit
                  _
              $region51: #{conv2d_block.1} parent=35 // pred_fallthru
                _
            $region36: #{conv2d_block.1} parent=31 // pred_fallthru
              _
            // Predicated region
            $region37: #{conv2d_block.1} parent=31 // pred_check
              _
            $region38: #{conv2d_block.1} parent=31 // pred_check_branch
              %191 = sbr.rel (0) target = $region40
            $region39: #{conv2d_block.1} parent=31 // pred_region
              %s193 = ssub.s32 4, 1
              loop: start=0, step=1, limit=1
              $region41: #{conv2d_block.1} parent=39 // loop_pre_header
                _
              $region42: #{conv2d_block.1} parent=39 // loop_header
                %s195 = sphi 0, %s199
                %p196 = scmp.ge.s32.totalorder %s195, 1
                %s200 = sphi %s185, %s185
                %s201 = sphi %s181, %s181
              $region43: #{conv2d_block.1} parent=39 // loop_header_branch
                %198 = sbr.rel (%p196) target = $region47
              $region44: #{conv2d_block.1} parent=39 // loop_body
                %v202 = vld [vmem:[%s200] sm:%s193]
                %203 = vst [vmem:[%s201] sm:%s193] %v202
                %v204 = vld [vmem:[%s200 + $0x4] sm:%s193]
                %205 = vst [vmem:[%s201 + $0x2] sm:%s193] %v204
                %v206 = vld [vmem:[%s200 + $0x8] sm:%s193]
                %207 = vst [vmem:[%s201 + $0x4] sm:%s193] %v206
                %v208 = vld [vmem:[%s200 + $0xc] sm:%s193]
                %209 = vst [vmem:[%s201 + $0x6] sm:%s193] %v208
              $region45: #{conv2d_block.1} parent=39 // loop_footer
                %s199 = sadd.s32 1, %s195
              $region46: #{conv2d_block.1} parent=39 // loop_footer_branch
                %194 = sbr.rel target = $region42
              $region47: #{conv2d_block.1} parent=39 // loop_exit
                _
            $region40: #{conv2d_block.1} parent=31 // pred_fallthru
              _
          $region32: #{conv2d_block.1} parent=27 // pred_fallthru
            _
          %238 = vnop
        $region28: #{conv2d_block.1} parent=23 // pred_fallthru
          _
        // Predicated region
        $region66: #{conv2d_block.1} parent=23 // pred_check
          %p239 = pneg %p74
        $region67: #{conv2d_block.1} parent=23 // pred_check_branch
          %241 = sbr.rel (%p239) target = $region69
        $region68: #{conv2d_block.1} parent=23 // pred_region
          %s242 = sand.u32 %s64, 1
          %s243 = sand.u32 %s64, 1
          %s244 = smul.addr %s243, 8
          %s245 = scalar_lea.vmem [#allocation4], %s244
          %s246 = sadd.s32 %s18, 1
          %s247 = smul.addr %s17, 8
          %s248 = sadd.s32 %s246, %s247
          %s249 = smul.addr %s248, 2
          %s250 = scalar_lea.vmem %s1, %s249
          // Predicated region
          $region70: #{conv2d_block.1} parent=68 // pred_check
            _
          $region71: #{conv2d_block.1} parent=68 // pred_check_branch
            %252 = sbr.rel (0) target = $region73
          $region72: #{conv2d_block.1} parent=68 // pred_region
            // Predicated region
            $region74: #{conv2d_block.1} parent=72 // pred_check
              _
            $region75: #{conv2d_block.1} parent=72 // pred_check_branch
              %254 = sbr.rel target = $region77
            $region76: #{conv2d_block.1} parent=72 // pred_region
              // Predicated region
              $region89: #{conv2d_block.1} parent=76 // pred_check
                _
              $region90: #{conv2d_block.1} parent=76 // pred_check_branch
                %276 = sbr.rel (0) target = $region92
              $region91: #{conv2d_block.1} parent=76 // pred_region
                loop: start=0, step=1, limit=1
                $region93: #{conv2d_block.1} parent=91 // loop_pre_header
                  _
                $region94: #{conv2d_block.1} parent=91 // loop_header
                  %s278 = sphi 0, %s282
                  %p279 = scmp.ge.s32.totalorder %s278, 1
                  %s283 = sphi %s250, %s250
                  %s284 = sphi %s245, %s245
                $region95: #{conv2d_block.1} parent=91 // loop_header_branch
                  %281 = sbr.rel (%p279) target = $region99
                $region96: #{conv2d_block.1} parent=91 // loop_body
                  _
                $region97: #{conv2d_block.1} parent=91 // loop_footer
                  %s282 = sadd.s32 1, %s278
                $region98: #{conv2d_block.1} parent=91 // loop_footer_branch
                  %277 = sbr.rel target = $region94
                $region99: #{conv2d_block.1} parent=91 // loop_exit
                  _
                %s286 = ssub.s32 4, 1
                loop: start=0, step=1, limit=1
                $region100: #{conv2d_block.1} parent=91 // loop_pre_header
                  _
                $region101: #{conv2d_block.1} parent=91 // loop_header
                  %s288 = sphi 0, %s292
                  %p289 = scmp.ge.s32.totalorder %s288, 1
                  %s293 = sphi %s250, %s250
                  %s294 = sphi %s245, %s245
                $region102: #{conv2d_block.1} parent=91 // loop_header_branch
                  %291 = sbr.rel (%p289) target = $region106
                $region103: #{conv2d_block.1} parent=91 // loop_body
                  %v295 = vld [vmem:[%s293] sm:%s286]
                  %296 = vst [vmem:[%s294] sm:%s286] %v295
                  %v297 = vld [vmem:[%s293 + $0x4] sm:%s286]
                  %298 = vst [vmem:[%s294 + $0x2] sm:%s286] %v297
                  %v299 = vld [vmem:[%s293 + $0x8] sm:%s286]
                  %300 = vst [vmem:[%s294 + $0x4] sm:%s286] %v299
                  %v301 = vld [vmem:[%s293 + $0xc] sm:%s286]
                  %302 = vst [vmem:[%s294 + $0x6] sm:%s286] %v301
                $region104: #{conv2d_block.1} parent=91 // loop_footer
                  %s292 = sadd.s32 1, %s288
                $region105: #{conv2d_block.1} parent=91 // loop_footer_branch
                  %287 = sbr.rel target = $region101
                $region106: #{conv2d_block.1} parent=91 // loop_exit
                  _
              $region92: #{conv2d_block.1} parent=76 // pred_fallthru
                _
            $region77: #{conv2d_block.1} parent=72 // pred_fallthru
              _
            // Predicated region
            $region78: #{conv2d_block.1} parent=72 // pred_check
              _
            $region79: #{conv2d_block.1} parent=72 // pred_check_branch
              %256 = sbr.rel (0) target = $region81
            $region80: #{conv2d_block.1} parent=72 // pred_region
              %s258 = ssub.s32 4, 1
              loop: start=0, step=1, limit=1
              $region82: #{conv2d_block.1} parent=80 // loop_pre_header
                _
              $region83: #{conv2d_block.1} parent=80 // loop_header
                %s260 = sphi 0, %s264
                %p261 = scmp.ge.s32.totalorder %s260, 1
                %s265 = sphi %s250, %s250
                %s266 = sphi %s245, %s245
              $region84: #{conv2d_block.1} parent=80 // loop_header_branch
                %263 = sbr.rel (%p261) target = $region88
              $region85: #{conv2d_block.1} parent=80 // loop_body
                %v267 = vld [vmem:[%s265] sm:%s258]
                %268 = vst [vmem:[%s266] sm:%s258] %v267
                %v269 = vld [vmem:[%s265 + $0x4] sm:%s258]
                %270 = vst [vmem:[%s266 + $0x2] sm:%s258] %v269
                %v271 = vld [vmem:[%s265 + $0x8] sm:%s258]
                %272 = vst [vmem:[%s266 + $0x4] sm:%s258] %v271
                %v273 = vld [vmem:[%s265 + $0xc] sm:%s258]
                %274 = vst [vmem:[%s266 + $0x6] sm:%s258] %v273
              $region86: #{conv2d_block.1} parent=80 // loop_footer
                %s264 = sadd.s32 1, %s260
              $region87: #{conv2d_block.1} parent=80 // loop_footer_branch
                %259 = sbr.rel target = $region83
              $region88: #{conv2d_block.1} parent=80 // loop_exit
                _
            $region81: #{conv2d_block.1} parent=72 // pred_fallthru
              _
          $region73: #{conv2d_block.1} parent=68 // pred_fallthru
            _
          %303 = vnop
        $region69: #{conv2d_block.1} parent=23 // pred_fallthru
          _
      $region24: #{conv2d_block.1} parent=5 // pred_fallthru
        _
      %p304 = scmp.le.s32.totalorder 1, %s10
      %p305 = scmp.lt.s32.totalorder %s10, 3
      %p306 = pnand %p304, %p305
      %p307 = pneg %p306
      // Predicated region
      $region107: #{conv2d_block.1} parent=5 // pred_check
        _
      $region108: #{conv2d_block.1} parent=5 // pred_check_branch
        %309 = sbr.rel (%p306) target = $region110
      $region109: #{conv2d_block.1} parent=5 // pred_region
        %s310 = ssub.s32 %s10, 1
        %s311 = sand.u32 %s37, 1
        %s312 = sand.u32 %s37, 1
        %s313 = smul.addr %s312, 8
        %s314 = scalar_lea.vmem [#allocation3], %s313
        // Predicated region
        $region111: #{conv2d_block.1} parent=109 // pred_check
          %p315 = pneg %p50
        $region112: #{conv2d_block.1} parent=109 // pred_check_branch
          %317 = sbr.rel (%p315) target = $region114
        $region113: #{conv2d_block.1} parent=109 // pred_region
          _
        $region114: #{conv2d_block.1} parent=109 // pred_fallthru
          _
        %s318 = sand.u32 %s67, 1
        %s319 = sand.u32 %s67, 1
        %s320 = smul.addr %s319, 8
        %s321 = scalar_lea.vmem [#allocation4], %s320
        // Predicated region
        $region115: #{conv2d_block.1} parent=109 // pred_check
          %p322 = pneg %p80
        $region116: #{conv2d_block.1} parent=109 // pred_check_branch
          %324 = sbr.rel (%p322) target = $region118
        $region117: #{conv2d_block.1} parent=109 // pred_region
          _
        $region118: #{conv2d_block.1} parent=109 // pred_fallthru
          _
        %s325 = sand.u32 %s37, 1
        %s326 = sand.u32 %s37, 1
        %s327 = smul.addr %s326, 8
        %s328 = scalar_lea.vmem [#allocation3], %s327
        %p329 = pneg %p50
        %p330 = pneg %p47
        %s331 = sand.u32 %s67, 1
        %s332 = sand.u32 %s67, 1
        %s333 = smul.addr %s332, 8
        %s334 = scalar_lea.vmem [#allocation4], %s333
        %p335 = pneg %p80
        %p336 = pneg %p77
        %p337 = pneg %p101
        %p338 = pneg %p98
        %p339 = pneg %p122
        %p340 = pneg %p119
        %p341 = pneg %p150
        %p342 = pneg %p147
        %p343 = scmp.lt.s32.totalorder %s19, 1
        %s344 = scalar_select %p343, %s19, 1
        %p345 = scmp.lt.s32.totalorder %s20, 0
        %s346 = scalar_select %p345, %s20, 0
        %s347 = sadd.s32 %s346, %s344
        %s348 = smul.addr %s347, 4
        %s349 = scalar_lea.vmem %s4, %s348
        %s350 = sadd.s32 %s20, 1
        %p351 = scmp.lt.s32.totalorder %s19, 1
        %s352 = scalar_select %p351, %s19, 1
        %p353 = scmp.lt.s32.totalorder %s20, 0
        %s354 = scalar_select %p353, %s20, 0
        %s355 = sadd.s32 %s354, %s352
        %s356 = smul.addr %s355, 4
        %s357 = scalar_lea.vmem %s4, %s356
        %v359 = vld [vmem:[%s314] sm:$0x3]
        %v360 = vld [vmem:[%s314 + $0x2] sm:$0x3]
        %v361 = vld [vmem:[%s314 + $0x4] sm:$0x3]
        %v362 = vld [vmem:[%s314 + $0x6] sm:$0x3]
        %v363 = vld [vmem:[%s321] sm:$0x3]
        %v364 = vld [vmem:[%s321 + $0x2] sm:$0x3]
        %v365 = vld [vmem:[%s321 + $0x4] sm:$0x3]
        %v366 = vld [vmem:[%s321 + $0x6] sm:$0x3]
        %367 = vst [vmem:[#allocation2] sm:$0xff] 0.0
        %v368 = vld [vmem:[#allocation2] sm:$0xff]
        %v369 = vld [vmem:[%s2] sm:$0xf]
        %vm370 = vcmask 31744
        %v372 = vsel %vm370, %v369, 0
        %vm374 = vcmask 1041408
        %v376 = vsel %vm374, %v359, 0
        %378 = vmatpush.bf16.msra.mxu0 0
        %379 = vmatpush.bf16.msra.mxu0 0
        %380 = vmatpush.bf16.msra.mxu0 0
        %381 = vmatpush.bf16.msra.mxu0 0
        %382 = vmatpush.bf16.msra.mxu0 0
        %383 = vmatpush.bf16.msra.mxu0 0
        %384 = vmatpush.bf16.msra.mxu0 0
        %385 = vmatpush.bf16.msra.mxu0 %v376
        %386 = vmatmul.bf16.gmra.mxu0 %v372
        %v387 = vpop.f32.mrf.mxu0
        %v388 = vadd.f32 0.0, %v387
        %v389 = vpop.f32.mrf.mxu0
        %390 = vdwg.mxu0
        %v391 = vadd.f32 %v368, %v388
        %392 = vst [vmem:[#allocation2] sm:$0xff] %v391
        %v393 = vld [vmem:[#allocation2] sm:$0xff]
        %s394 = scalar_lea.vmem %s2, 4
        %v395 = vld [vmem:[%s394] sm:$0xf]
        %v397 = vsel %vm370, %v395, 0
        %v400 = vsel %vm374, %v360, 0
        %402 = vmatpush.bf16.msra.mxu0 0
        %403 = vmatpush.bf16.msra.mxu0 0
        %404 = vmatpush.bf16.msra.mxu0 0
        %405 = vmatpush.bf16.msra.mxu0 0
        %406 = vmatpush.bf16.msra.mxu0 0
        %407 = vmatpush.bf16.msra.mxu0 0
        %408 = vmatpush.bf16.msra.mxu0 0
        %409 = vmatpush.bf16.msra.mxu0 %v400
        %410 = vmatmul.bf16.gmra.mxu0 %v397
        %v411 = vpop.f32.mrf.mxu0
        %v412 = vadd.f32 0.0, %v411
        %v413 = vpop.f32.mrf.mxu0
        %414 = vdwg.mxu0
        %v415 = vadd.f32 %v393, %v412
        %416 = vst [vmem:[#allocation2] sm:$0xff] %v415
        %v417 = vld [vmem:[#allocation2] sm:$0xff]
        %s418 = scalar_lea.vmem %s2, 8
        %v419 = vld [vmem:[%s418] sm:$0xf]
        %422 = vrot.lane.b32.xlu0 %v359, 127
        %v423 = vpop.permute.xlu0 %422
        %424 = vrot.lane.b32.xlu0 %v363, 127
        %v425 = vpop.permute.xlu0 %424
        %vm426 = vcmask 1039360
        %v427 = vsel %vm426, %v423, %v425
        %v429 = vsel %vm370, %v419, 0
        %v432 = vsel %vm374, %v427, 0
        %434 = vmatpush.bf16.msra.mxu0 0
        %435 = vmatpush.bf16.msra.mxu0 0
        %436 = vmatpush.bf16.msra.mxu0 0
        %437 = vmatpush.bf16.msra.mxu0 0
        %438 = vmatpush.bf16.msra.mxu0 0
        %439 = vmatpush.bf16.msra.mxu0 0
        %440 = vmatpush.bf16.msra.mxu0 0
        %441 = vmatpush.bf16.msra.mxu0 %v432
        %442 = vmatmul.bf16.gmra.mxu0 %v429
        %v443 = vpop.f32.mrf.mxu0
        %v444 = vadd.f32 0.0, %v443
        %v445 = vpop.f32.mrf.mxu0
        %446 = vdwg.mxu0
        %v447 = vadd.f32 %v417, %v444
        %448 = vst [vmem:[#allocation2] sm:$0xff] %v447
        %v449 = vld [vmem:[#allocation2] sm:$0xff]
        %s450 = scalar_lea.vmem %s2, 12
        %v451 = vld [vmem:[%s450] sm:$0xf]
        %454 = vrot.lane.b32.xlu0 %v360, 127
        %v455 = vpop.permute.xlu0 %454
        %456 = vrot.lane.b32.xlu0 %v364, 127
        %v457 = vpop.permute.xlu0 %456
        %v458 = vsel %vm426, %v455, %v457
        %v460 = vsel %vm370, %v451, 0
        %v463 = vsel %vm374, %v458, 0
        %465 = vmatpush.bf16.msra.mxu0 0
        %466 = vmatpush.bf16.msra.mxu0 0
        %467 = vmatpush.bf16.msra.mxu0 0
        %468 = vmatpush.bf16.msra.mxu0 0
        %469 = vmatpush.bf16.msra.mxu0 0
        %470 = vmatpush.bf16.msra.mxu0 0
        %471 = vmatpush.bf16.msra.mxu0 0
        %472 = vmatpush.bf16.msra.mxu0 %v463
        %473 = vmatmul.bf16.gmra.mxu0 %v460
        %v474 = vpop.f32.mrf.mxu0
        %v475 = vadd.f32 0.0, %v474
        %v476 = vpop.f32.mrf.mxu0
        %477 = vdwg.mxu0
        %v478 = vadd.f32 %v449, %v475
        %479 = vst [vmem:[#allocation2] sm:$0xff] %v478
        %v480 = vld [vmem:[#allocation2] sm:$0xff]
        %s481 = scalar_lea.vmem %s2, 16
        %v482 = vld [vmem:[%s481] sm:$0xf]
        %483 = vrot.lane.b32.xlu0 %v359, 126
        %v484 = vpop.permute.xlu0 %483
        %485 = vrot.lane.b32.xlu0 %v363, 126
        %v486 = vpop.permute.xlu0 %485
        %vm487 = vcmask 1031168
        %v488 = vsel %vm487, %v484, %v486
        %v490 = vsel %vm370, %v482, 0
        %v493 = vsel %vm374, %v488, 0
        %495 = vmatpush.bf16.msra.mxu0 0
        %496 = vmatpush.bf16.msra.mxu0 0
        %497 = vmatpush.bf16.msra.mxu0 0
        %498 = vmatpush.bf16.msra.mxu0 0
        %499 = vmatpush.bf16.msra.mxu0 0
        %500 = vmatpush.bf16.msra.mxu0 0
        %501 = vmatpush.bf16.msra.mxu0 0
        %502 = vmatpush.bf16.msra.mxu0 %v493
        %503 = vmatmul.bf16.gmra.mxu0 %v490
        %v504 = vpop.f32.mrf.mxu0
        %v505 = vadd.f32 0.0, %v504
        %v506 = vpop.f32.mrf.mxu0
        %507 = vdwg.mxu0
        %v508 = vadd.f32 %v480, %v505
        %509 = vst [vmem:[#allocation2] sm:$0xff] %v508
        %v510 = vld [vmem:[#allocation2] sm:$0xff]
        %s511 = scalar_lea.vmem %s2, 20
        %v512 = vld [vmem:[%s511] sm:$0xf]
        %v514 = vsel %vm370, %v512, 0
        %v517 = vsel %vm374, %v361, 0
        %519 = vmatpush.bf16.msra.mxu0 0
        %520 = vmatpush.bf16.msra.mxu0 0
        %521 = vmatpush.bf16.msra.mxu0 0
        %522 = vmatpush.bf16.msra.mxu0 0
        %523 = vmatpush.bf16.msra.mxu0 0
        %524 = vmatpush.bf16.msra.mxu0 0
        %525 = vmatpush.bf16.msra.mxu0 0
        %526 = vmatpush.bf16.msra.mxu0 %v517
        %527 = vmatmul.bf16.gmra.mxu0 %v514
        %v528 = vpop.f32.mrf.mxu0
        %v529 = vadd.f32 0.0, %v528
        %v530 = vpop.f32.mrf.mxu0
        %531 = vdwg.mxu0
        %v532 = vadd.f32 %v510, %v529
        %533 = vst [vmem:[#allocation2] sm:$0xff] %v532
        %v534 = vld [vmem:[#allocation2] sm:$0xff]
        %s535 = scalar_lea.vmem %s2, 24
        %v536 = vld [vmem:[%s535] sm:$0xf]
        %v538 = vsel %vm370, %v536, 0
        %v541 = vsel %vm374, %v362, 0
        %543 = vmatpush.bf16.msra.mxu0 0
        %544 = vmatpush.bf16.msra.mxu0 0
        %545 = vmatpush.bf16.msra.mxu0 0
        %546 = vmatpush.bf16.msra.mxu0 0
        %547 = vmatpush.bf16.msra.mxu0 0
        %548 = vmatpush.bf16.msra.mxu0 0
        %549 = vmatpush.bf16.msra.mxu0 0
        %550 = vmatpush.bf16.msra.mxu0 %v541
        %551 = vmatmul.bf16.gmra.mxu0 %v538
        %v552 = vpop.f32.mrf.mxu0
        %v553 = vadd.f32 0.0, %v552
        %v554 = vpop.f32.mrf.mxu0
        %555 = vdwg.mxu0
        %v556 = vadd.f32 %v534, %v553
        %557 = vst [vmem:[#allocation2] sm:$0xff] %v556
        %v558 = vld [vmem:[#allocation2] sm:$0xff]
        %s559 = scalar_lea.vmem %s2, 28
        %v560 = vld [vmem:[%s559] sm:$0xf]
        %563 = vrot.lane.b32.xlu0 %v361, 127
        %v564 = vpop.permute.xlu0 %563
        %565 = vrot.lane.b32.xlu0 %v365, 127
        %v566 = vpop.permute.xlu0 %565
        %v567 = vsel %vm426, %v564, %v566
        %v569 = vsel %vm370, %v560, 0
        %v572 = vsel %vm374, %v567, 0
        %574 = vmatpush.bf16.msra.mxu0 0
        %575 = vmatpush.bf16.msra.mxu0 0
        %576 = vmatpush.bf16.msra.mxu0 0
        %577 = vmatpush.bf16.msra.mxu0 0
        %578 = vmatpush.bf16.msra.mxu0 0
        %579 = vmatpush.bf16.msra.mxu0 0
        %580 = vmatpush.bf16.msra.mxu0 0
        %581 = vmatpush.bf16.msra.mxu0 %v572
        %582 = vmatmul.bf16.gmra.mxu0 %v569
        %v583 = vpop.f32.mrf.mxu0
        %v584 = vadd.f32 0.0, %v583
        %v585 = vpop.f32.mrf.mxu0
        %586 = vdwg.mxu0
        %v587 = vadd.f32 %v558, %v584
        %588 = vst [vmem:[#allocation2] sm:$0xff] %v587
        %v589 = vld [vmem:[#allocation2] sm:$0xff]
        %s590 = scalar_lea.vmem %s2, 32
        %v591 = vld [vmem:[%s590] sm:$0xf]
        %594 = vrot.lane.b32.xlu0 %v362, 127
        %v595 = vpop.permute.xlu0 %594
        %596 = vrot.lane.b32.xlu0 %v366, 127
        %v597 = vpop.permute.xlu0 %596
        %v598 = vsel %vm426, %v595, %v597
        %v600 = vsel %vm370, %v591, 0
        %v603 = vsel %vm374, %v598, 0
        %605 = vmatpush.bf16.msra.mxu0 0
        %606 = vmatpush.bf16.msra.mxu0 0
        %607 = vmatpush.bf16.msra.mxu0 0
        %608 = vmatpush.bf16.msra.mxu0 0
        %609 = vmatpush.bf16.msra.mxu0 0
        %610 = vmatpush.bf16.msra.mxu0 0
        %611 = vmatpush.bf16.msra.mxu0 0
        %612 = vmatpush.bf16.msra.mxu0 %v603
        %613 = vmatmul.bf16.gmra.mxu0 %v600
        %v614 = vpop.f32.mrf.mxu0
        %v615 = vadd.f32 0.0, %v614
        %v616 = vpop.f32.mrf.mxu0
        %617 = vdwg.mxu0
        %v618 = vadd.f32 %v589, %v615
        %619 = vst [vmem:[#allocation2] sm:$0xff] %v618
        %v620 = vld [vmem:[#allocation2] sm:$0xff]
        %s621 = scalar_lea.vmem %s2, 36
        %v622 = vld [vmem:[%s621] sm:$0xf]
        %623 = vrot.lane.b32.xlu0 %v361, 126
        %v624 = vpop.permute.xlu0 %623
        %625 = vrot.lane.b32.xlu0 %v365, 126
        %v626 = vpop.permute.xlu0 %625
        %v627 = vsel %vm487, %v624, %v626
        %v629 = vsel %vm370, %v622, 0
        %v632 = vsel %vm374, %v627, 0
        %634 = vmatpush.bf16.msra.mxu0 0
        %635 = vmatpush.bf16.msra.mxu0 0
        %636 = vmatpush.bf16.msra.mxu0 0
        %637 = vmatpush.bf16.msra.mxu0 0
        %638 = vmatpush.bf16.msra.mxu0 0
        %639 = vmatpush.bf16.msra.mxu0 0
        %640 = vmatpush.bf16.msra.mxu0 0
        %641 = vmatpush.bf16.msra.mxu0 %v632
        %642 = vmatmul.bf16.gmra.mxu0 %v629
        %v643 = vpop.f32.mrf.mxu0
        %v644 = vadd.f32 0.0, %v643
        %v645 = vpop.f32.mrf.mxu0
        %646 = vdwg.mxu0
        %v647 = vadd.f32 %v620, %v644
        %648 = vst [vmem:[#allocation2] sm:$0xff] %v647
        %v649 = vld [vmem:[#allocation2] sm:$0xff]
        %s650 = scalar_lea.vmem %s2, 40
        %v651 = vld [vmem:[%s650] sm:$0xf]
        %652 = vrot.lane.b32.xlu0 %v359, 118
        %v653 = vpop.permute.xlu0 %652
        %654 = vrot.lane.b32.xlu0 %v363, 118
        %v655 = vpop.permute.xlu0 %654
        %vm656 = vcmask 965632
        %v657 = vsel %vm656, %v653, %v655
        %v659 = vsel %vm370, %v651, 0
        %v662 = vsel %vm374, %v657, 0
        %664 = vmatpush.bf16.msra.mxu0 0
        %665 = vmatpush.bf16.msra.mxu0 0
        %666 = vmatpush.bf16.msra.mxu0 0
        %667 = vmatpush.bf16.msra.mxu0 0
        %668 = vmatpush.bf16.msra.mxu0 0
        %669 = vmatpush.bf16.msra.mxu0 0
        %670 = vmatpush.bf16.msra.mxu0 0
        %671 = vmatpush.bf16.msra.mxu0 %v662
        %672 = vmatmul.bf16.gmra.mxu0 %v659
        %v673 = vpop.f32.mrf.mxu0
        %v674 = vadd.f32 0.0, %v673
        %v675 = vpop.f32.mrf.mxu0
        %676 = vdwg.mxu0
        %v677 = vadd.f32 %v649, %v674
        %678 = vst [vmem:[#allocation2] sm:$0xff] %v677
        %v679 = vld [vmem:[#allocation2] sm:$0xff]
        %s680 = scalar_lea.vmem %s2, 44
        %v681 = vld [vmem:[%s680] sm:$0xf]
        %682 = vrot.lane.b32.xlu0 %v360, 118
        %v683 = vpop.permute.xlu0 %682
        %684 = vrot.lane.b32.xlu0 %v364, 118
        %v685 = vpop.permute.xlu0 %684
        %v686 = vsel %vm656, %v683, %v685
        %v688 = vsel %vm370, %v681, 0
        %v691 = vsel %vm374, %v686, 0
        %693 = vmatpush.bf16.msra.mxu0 0
        %694 = vmatpush.bf16.msra.mxu0 0
        %695 = vmatpush.bf16.msra.mxu0 0
        %696 = vmatpush.bf16.msra.mxu0 0
        %697 = vmatpush.bf16.msra.mxu0 0
        %698 = vmatpush.bf16.msra.mxu0 0
        %699 = vmatpush.bf16.msra.mxu0 0
        %700 = vmatpush.bf16.msra.mxu0 %v691
        %701 = vmatmul.bf16.gmra.mxu0 %v688
        %v702 = vpop.f32.mrf.mxu0
        %v703 = vadd.f32 0.0, %v702
        %v704 = vpop.f32.mrf.mxu0
        %705 = vdwg.mxu0
        %v706 = vadd.f32 %v679, %v703
        %707 = vst [vmem:[#allocation2] sm:$0xff] %v706
        %v708 = vld [vmem:[#allocation2] sm:$0xff]
        %s709 = scalar_lea.vmem %s2, 48
        %v710 = vld [vmem:[%s709] sm:$0xf]
        %711 = vrot.lane.b32.xlu0 %v359, 117
        %v712 = vpop.permute.xlu0 %711
        %713 = vrot.lane.b32.xlu0 %v363, 117
        %v714 = vpop.permute.xlu0 %713
        %vm715 = vcmask 957440
        %v716 = vsel %vm715, %v712, %v714
        %v718 = vsel %vm370, %v710, 0
        %v721 = vsel %vm374, %v716, 0
        %723 = vmatpush.bf16.msra.mxu0 0
        %724 = vmatpush.bf16.msra.mxu0 0
        %725 = vmatpush.bf16.msra.mxu0 0
        %726 = vmatpush.bf16.msra.mxu0 0
        %727 = vmatpush.bf16.msra.mxu0 0
        %728 = vmatpush.bf16.msra.mxu0 0
        %729 = vmatpush.bf16.msra.mxu0 0
        %730 = vmatpush.bf16.msra.mxu0 %v721
        %731 = vmatmul.bf16.gmra.mxu0 %v718
        %v732 = vpop.f32.mrf.mxu0
        %v733 = vadd.f32 0.0, %v732
        %v734 = vpop.f32.mrf.mxu0
        %735 = vdwg.mxu0
        %v736 = vadd.f32 %v708, %v733
        %737 = vst [vmem:[#allocation2] sm:$0xff] %v736
        %v738 = vld [vmem:[#allocation2] sm:$0xff]
        %s739 = scalar_lea.vmem %s2, 52
        %v740 = vld [vmem:[%s739] sm:$0xf]
        %741 = vrot.lane.b32.xlu0 %v360, 117
        %v742 = vpop.permute.xlu0 %741
        %743 = vrot.lane.b32.xlu0 %v364, 117
        %v744 = vpop.permute.xlu0 %743
        %v745 = vsel %vm715, %v742, %v744
        %v747 = vsel %vm370, %v740, 0
        %v750 = vsel %vm374, %v745, 0
        %752 = vmatpush.bf16.msra.mxu0 0
        %753 = vmatpush.bf16.msra.mxu0 0
        %754 = vmatpush.bf16.msra.mxu0 0
        %755 = vmatpush.bf16.msra.mxu0 0
        %756 = vmatpush.bf16.msra.mxu0 0
        %757 = vmatpush.bf16.msra.mxu0 0
        %758 = vmatpush.bf16.msra.mxu0 0
        %759 = vmatpush.bf16.msra.mxu0 %v750
        %760 = vmatmul.bf16.gmra.mxu0 %v747
        %v761 = vpop.f32.mrf.mxu0
        %v762 = vadd.f32 0.0, %v761
        %v763 = vpop.f32.mrf.mxu0
        %764 = vdwg.mxu0
        %v765 = vadd.f32 %v738, %v762
        %766 = vst [vmem:[#allocation2] sm:$0xff] %v765
        %v767 = vld [vmem:[#allocation2] sm:$0xff]
        %s768 = scalar_lea.vmem %s2, 56
        %v769 = vld [vmem:[%s768] sm:$0xf]
        %770 = vrot.lane.b32.xlu0 %v359, 116
        %v771 = vpop.permute.xlu0 %770
        %772 = vrot.lane.b32.xlu0 %v363, 116
        %v773 = vpop.permute.xlu0 %772
        %vm774 = vcmask 949248
        %v775 = vsel %vm774, %v771, %v773
        %v777 = vsel %vm370, %v769, 0
        %v780 = vsel %vm374, %v775, 0
        %782 = vmatpush.bf16.msra.mxu0 0
        %783 = vmatpush.bf16.msra.mxu0 0
        %784 = vmatpush.bf16.msra.mxu0 0
        %785 = vmatpush.bf16.msra.mxu0 0
        %786 = vmatpush.bf16.msra.mxu0 0
        %787 = vmatpush.bf16.msra.mxu0 0
        %788 = vmatpush.bf16.msra.mxu0 0
        %789 = vmatpush.bf16.msra.mxu0 %v780
        %790 = vmatmul.bf16.gmra.mxu0 %v777
        %v791 = vpop.f32.mrf.mxu0
        %v792 = vadd.f32 0.0, %v791
        %v793 = vpop.f32.mrf.mxu0
        %794 = vdwg.mxu0
        %v795 = vadd.f32 %v767, %v792
        %796 = vst [vmem:[#allocation2] sm:$0xff] %v795
        %v797 = vld [vmem:[#allocation2] sm:$0xff]
        %s798 = scalar_lea.vmem %s2, 60
        %v799 = vld [vmem:[%s798] sm:$0xf]
        %800 = vrot.lane.b32.xlu0 %v361, 118
        %v801 = vpop.permute.xlu0 %800
        %802 = vrot.lane.b32.xlu0 %v365, 118
        %v803 = vpop.permute.xlu0 %802
        %v804 = vsel %vm656, %v801, %v803
        %v806 = vsel %vm370, %v799, 0
        %v809 = vsel %vm374, %v804, 0
        %811 = vmatpush.bf16.msra.mxu0 0
        %812 = vmatpush.bf16.msra.mxu0 0
        %813 = vmatpush.bf16.msra.mxu0 0
        %814 = vmatpush.bf16.msra.mxu0 0
        %815 = vmatpush.bf16.msra.mxu0 0
        %816 = vmatpush.bf16.msra.mxu0 0
        %817 = vmatpush.bf16.msra.mxu0 0
        %818 = vmatpush.bf16.msra.mxu0 %v809
        %819 = vmatmul.bf16.gmra.mxu0 %v806
        %v820 = vpop.f32.mrf.mxu0
        %v821 = vadd.f32 0.0, %v820
        %v822 = vpop.f32.mrf.mxu0
        %823 = vdwg.mxu0
        %v824 = vadd.f32 %v797, %v821
        %825 = vst [vmem:[#allocation2] sm:$0xff] %v824
        %v826 = vld [vmem:[#allocation2] sm:$0xff]
        %s827 = scalar_lea.vmem %s2, 64
        %v828 = vld [vmem:[%s827] sm:$0xf]
        %829 = vrot.lane.b32.xlu0 %v362, 118
        %v830 = vpop.permute.xlu0 %829
        %831 = vrot.lane.b32.xlu0 %v366, 118
        %v832 = vpop.permute.xlu0 %831
        %v833 = vsel %vm656, %v830, %v832
        %v835 = vsel %vm370, %v828, 0
        %v838 = vsel %vm374, %v833, 0
        %840 = vmatpush.bf16.msra.mxu0 0
        %841 = vmatpush.bf16.msra.mxu0 0
        %842 = vmatpush.bf16.msra.mxu0 0
        %843 = vmatpush.bf16.msra.mxu0 0
        %844 = vmatpush.bf16.msra.mxu0 0
        %845 = vmatpush.bf16.msra.mxu0 0
        %846 = vmatpush.bf16.msra.mxu0 0
        %847 = vmatpush.bf16.msra.mxu0 %v838
        %848 = vmatmul.bf16.gmra.mxu0 %v835
        %v849 = vpop.f32.mrf.mxu0
        %v850 = vadd.f32 0.0, %v849
        %v851 = vpop.f32.mrf.mxu0
        %852 = vdwg.mxu0
        %v853 = vadd.f32 %v826, %v850
        %854 = vst [vmem:[#allocation2] sm:$0xff] %v853
        %v855 = vld [vmem:[#allocation2] sm:$0xff]
        %s856 = scalar_lea.vmem %s2, 68
        %v857 = vld [vmem:[%s856] sm:$0xf]
        %858 = vrot.lane.b32.xlu0 %v361, 117
        %v859 = vpop.permute.xlu0 %858
        %860 = vrot.lane.b32.xlu0 %v365, 117
        %v861 = vpop.permute.xlu0 %860
        %v862 = vsel %vm715, %v859, %v861
        %v864 = vsel %vm370, %v857, 0
        %v867 = vsel %vm374, %v862, 0
        %869 = vmatpush.bf16.msra.mxu0 0
        %870 = vmatpush.bf16.msra.mxu0 0
        %871 = vmatpush.bf16.msra.mxu0 0
        %872 = vmatpush.bf16.msra.mxu0 0
        %873 = vmatpush.bf16.msra.mxu0 0
        %874 = vmatpush.bf16.msra.mxu0 0
        %875 = vmatpush.bf16.msra.mxu0 0
        %876 = vmatpush.bf16.msra.mxu0 %v867
        %877 = vmatmul.bf16.gmra.mxu0 %v864
        %v878 = vpop.f32.mrf.mxu0
        %v879 = vadd.f32 0.0, %v878
        %v880 = vpop.f32.mrf.mxu0
        %881 = vdwg.mxu0
        %v882 = vadd.f32 %v855, %v879
        %883 = vst [vmem:[#allocation2] sm:$0xff] %v882
        %v884 = vld [vmem:[#allocation2] sm:$0xff]
        %s885 = scalar_lea.vmem %s2, 72
        %v886 = vld [vmem:[%s885] sm:$0xf]
        %887 = vrot.lane.b32.xlu0 %v362, 117
        %v888 = vpop.permute.xlu0 %887
        %889 = vrot.lane.b32.xlu0 %v366, 117
        %v890 = vpop.permute.xlu0 %889
        %v891 = vsel %vm715, %v888, %v890
        %v893 = vsel %vm370, %v886, 0
        %v896 = vsel %vm374, %v891, 0
        %898 = vmatpush.bf16.msra.mxu0 0
        %899 = vmatpush.bf16.msra.mxu0 0
        %900 = vmatpush.bf16.msra.mxu0 0
        %901 = vmatpush.bf16.msra.mxu0 0
        %902 = vmatpush.bf16.msra.mxu0 0
        %903 = vmatpush.bf16.msra.mxu0 0
        %904 = vmatpush.bf16.msra.mxu0 0
        %905 = vmatpush.bf16.msra.mxu0 %v896
        %906 = vmatmul.bf16.gmra.mxu0 %v893
        %v907 = vpop.f32.mrf.mxu0
        %v908 = vadd.f32 0.0, %v907
        %v909 = vpop.f32.mrf.mxu0
        %910 = vdwg.mxu0
        %v911 = vadd.f32 %v884, %v908
        %912 = vst [vmem:[#allocation2] sm:$0xff] %v911
        %v913 = vld [vmem:[#allocation2] sm:$0xff]
        %s914 = scalar_lea.vmem %s2, 76
        %v915 = vld [vmem:[%s914] sm:$0xf]
        %916 = vrot.lane.b32.xlu0 %v361, 116
        %v917 = vpop.permute.xlu0 %916
        %918 = vrot.lane.b32.xlu0 %v365, 116
        %v919 = vpop.permute.xlu0 %918
        %v920 = vsel %vm774, %v917, %v919
        %v922 = vsel %vm370, %v915, 0
        %v925 = vsel %vm374, %v920, 0
        %927 = vmatpush.bf16.msra.mxu0 0
        %928 = vmatpush.bf16.msra.mxu0 0
        %929 = vmatpush.bf16.msra.mxu0 0
        %930 = vmatpush.bf16.msra.mxu0 0
        %931 = vmatpush.bf16.msra.mxu0 0
        %932 = vmatpush.bf16.msra.mxu0 0
        %933 = vmatpush.bf16.msra.mxu0 0
        %934 = vmatpush.bf16.msra.mxu0 %v925
        %935 = vmatmul.bf16.gmra.mxu0 %v922
        %v936 = vpop.f32.mrf.mxu0
        %v937 = vadd.f32 0.0, %v936
        %v938 = vpop.f32.mrf.mxu0
        %939 = vdwg.mxu0
        %v940 = vadd.f32 %v913, %v937
        %941 = vst [vmem:[#allocation2] sm:$0xff] %v940
        %v942 = vld [vmem:[#allocation2] sm:$0xff]
        %s943 = scalar_lea.vmem %s2, 80
        %v944 = vld [vmem:[%s943] sm:$0xf]
        %945 = vrot.lane.b32.xlu0 %v359, 108
        %v946 = vpop.permute.xlu0 %945
        %947 = vrot.lane.b32.xlu0 %v363, 108
        %v948 = vpop.permute.xlu0 %947
        %vm949 = vcmask 883712
        %v950 = vsel %vm949, %v946, %v948
        %v952 = vsel %vm370, %v944, 0
        %v955 = vsel %vm374, %v950, 0
        %957 = vmatpush.bf16.msra.mxu0 0
        %958 = vmatpush.bf16.msra.mxu0 0
        %959 = vmatpush.bf16.msra.mxu0 0
        %960 = vmatpush.bf16.msra.mxu0 0
        %961 = vmatpush.bf16.msra.mxu0 0
        %962 = vmatpush.bf16.msra.mxu0 0
        %963 = vmatpush.bf16.msra.mxu0 0
        %964 = vmatpush.bf16.msra.mxu0 %v955
        %965 = vmatmul.bf16.gmra.mxu0 %v952
        %v966 = vpop.f32.mrf.mxu0
        %v967 = vadd.f32 0.0, %v966
        %v968 = vpop.f32.mrf.mxu0
        %969 = vdwg.mxu0
        %v970 = vadd.f32 %v942, %v967
        %971 = vst [vmem:[#allocation2] sm:$0xff] %v970
        %v972 = vld [vmem:[#allocation2] sm:$0xff]
        %s973 = scalar_lea.vmem %s2, 84
        %v974 = vld [vmem:[%s973] sm:$0xf]
        %975 = vrot.lane.b32.xlu0 %v360, 108
        %v976 = vpop.permute.xlu0 %975
        %977 = vrot.lane.b32.xlu0 %v364, 108
        %v978 = vpop.permute.xlu0 %977
        %v979 = vsel %vm949, %v976, %v978
        %v981 = vsel %vm370, %v974, 0
        %v984 = vsel %vm374, %v979, 0
        %986 = vmatpush.bf16.msra.mxu0 0
        %987 = vmatpush.bf16.msra.mxu0 0
        %988 = vmatpush.bf16.msra.mxu0 0
        %989 = vmatpush.bf16.msra.mxu0 0
        %990 = vmatpush.bf16.msra.mxu0 0
        %991 = vmatpush.bf16.msra.mxu0 0
        %992 = vmatpush.bf16.msra.mxu0 0
        %993 = vmatpush.bf16.msra.mxu0 %v984
        %994 = vmatmul.bf16.gmra.mxu0 %v981
        %v995 = vpop.f32.mrf.mxu0
        %v996 = vadd.f32 0.0, %v995
        %v997 = vpop.f32.mrf.mxu0
        %998 = vdwg.mxu0
        %v999 = vadd.f32 %v972, %v996
        %1000 = vst [vmem:[#allocation2] sm:$0xff] %v999
        %v1001 = vld [vmem:[#allocation2] sm:$0xff]
        %s1002 = scalar_lea.vmem %s2, 88
        %v1003 = vld [vmem:[%s1002] sm:$0xf]
        %1004 = vrot.lane.b32.xlu0 %v359, 107
        %v1005 = vpop.permute.xlu0 %1004
        %1006 = vrot.lane.b32.xlu0 %v363, 107
        %v1007 = vpop.permute.xlu0 %1006
        %vm1008 = vcmask 875520
        %v1009 = vsel %vm1008, %v1005, %v1007
        %v1011 = vsel %vm370, %v1003, 0
        %v1014 = vsel %vm374, %v1009, 0
        %1016 = vmatpush.bf16.msra.mxu0 0
        %1017 = vmatpush.bf16.msra.mxu0 0
        %1018 = vmatpush.bf16.msra.mxu0 0
        %1019 = vmatpush.bf16.msra.mxu0 0
        %1020 = vmatpush.bf16.msra.mxu0 0
        %1021 = vmatpush.bf16.msra.mxu0 0
        %1022 = vmatpush.bf16.msra.mxu0 0
        %1023 = vmatpush.bf16.msra.mxu0 %v1014
        %1024 = vmatmul.bf16.gmra.mxu0 %v1011
        %v1025 = vpop.f32.mrf.mxu0
        %v1026 = vadd.f32 0.0, %v1025
        %v1027 = vpop.f32.mrf.mxu0
        %1028 = vdwg.mxu0
        %v1029 = vadd.f32 %v1001, %v1026
        %1030 = vst [vmem:[#allocation2] sm:$0xff] %v1029
        %v1031 = vld [vmem:[#allocation2] sm:$0xff]
        %s1032 = scalar_lea.vmem %s2, 92
        %v1033 = vld [vmem:[%s1032] sm:$0xf]
        %1034 = vrot.lane.b32.xlu0 %v360, 107
        %v1035 = vpop.permute.xlu0 %1034
        %1036 = vrot.lane.b32.xlu0 %v364, 107
        %v1037 = vpop.permute.xlu0 %1036
        %v1038 = vsel %vm1008, %v1035, %v1037
        %v1040 = vsel %vm370, %v1033, 0
        %v1043 = vsel %vm374, %v1038, 0
        %1045 = vmatpush.bf16.msra.mxu0 0
        %1046 = vmatpush.bf16.msra.mxu0 0
        %1047 = vmatpush.bf16.msra.mxu0 0
        %1048 = vmatpush.bf16.msra.mxu0 0
        %1049 = vmatpush.bf16.msra.mxu0 0
        %1050 = vmatpush.bf16.msra.mxu0 0
        %1051 = vmatpush.bf16.msra.mxu0 0
        %1052 = vmatpush.bf16.msra.mxu0 %v1043
        %1053 = vmatmul.bf16.gmra.mxu0 %v1040
        %v1054 = vpop.f32.mrf.mxu0
        %v1055 = vadd.f32 0.0, %v1054
        %v1056 = vpop.f32.mrf.mxu0
        %1057 = vdwg.mxu0
        %v1058 = vadd.f32 %v1031, %v1055
        %1059 = vst [vmem:[#allocation2] sm:$0xff] %v1058
        %v1060 = vld [vmem:[#allocation2] sm:$0xff]
        %s1061 = scalar_lea.vmem %s2, 96
        %v1062 = vld [vmem:[%s1061] sm:$0xf]
        %1063 = vrot.lane.b32.xlu0 %v359, 106
        %v1064 = vpop.permute.xlu0 %1063
        %1065 = vrot.lane.b32.xlu0 %v363, 106
        %v1066 = vpop.permute.xlu0 %1065
        %vm1067 = vcmask 867328
        %v1068 = vsel %vm1067, %v1064, %v1066
        %v1070 = vsel %vm370, %v1062, 0
        %v1073 = vsel %vm374, %v1068, 0
        %1075 = vmatpush.bf16.msra.mxu0 0
        %1076 = vmatpush.bf16.msra.mxu0 0
        %1077 = vmatpush.bf16.msra.mxu0 0
        %1078 = vmatpush.bf16.msra.mxu0 0
        %1079 = vmatpush.bf16.msra.mxu0 0
        %1080 = vmatpush.bf16.msra.mxu0 0
        %1081 = vmatpush.bf16.msra.mxu0 0
        %1082 = vmatpush.bf16.msra.mxu0 %v1073
        %1083 = vmatmul.bf16.gmra.mxu0 %v1070
        %v1084 = vpop.f32.mrf.mxu0
        %v1085 = vadd.f32 0.0, %v1084
        %v1086 = vpop.f32.mrf.mxu0
        %1087 = vdwg.mxu0
        %v1088 = vadd.f32 %v1060, %v1085
        %1089 = vst [vmem:[#allocation2] sm:$0xff] %v1088
        %v1090 = vld [vmem:[#allocation2] sm:$0xff]
        %v1091 = vld [vmem:[%s3] sm:$0xff]
        %1093 = vset.pattern.permute.xlu0 0
        %1094 = vperm.xlu0 %1093, %v1091
        %v1095 = vpop.permute.xlu0 %1094
        %v1097 = vadd.f32 %v1090, %v1095
        %v1098 = vmul.f32 %v1097, 0.2
        %v1099 = vmax.f32 %v1097, %v1098
        %v1100 = vpack.c.bf16 %v1099, %v1099
        %1101 = vst [vmem:[%s357] sm:$0xf] %v1100
        %p1102 = scmp.lt.s32.totalorder %s19, 1
        %s1103 = scalar_select %p1102, %s19, 1
        %p1104 = scmp.lt.s32.totalorder %s20, 0
        %s1105 = scalar_select %p1104, %s20, 0
        %s1106 = sadd.s32 %s1105, %s1103
        %s1107 = smul.addr %s1106, 4
        %s1108 = scalar_lea.vmem %s4, %s1107
        // Predicated region
        $region119: #{conv2d_block.1} parent=109 // pred_check
          %p1109 = pneg %p147
        $region120: #{conv2d_block.1} parent=109 // pred_check_branch
          %1111 = sbr.rel (%p1109) target = $region122
        $region121: #{conv2d_block.1} parent=109 // pred_region
          _
        $region122: #{conv2d_block.1} parent=109 // pred_fallthru
          _
      $region110: #{conv2d_block.1} parent=5 // pred_fallthru
        _
      %p1112 = scmp.le.s32.totalorder 2, %s10
      // Predicated region
      $region123: #{conv2d_block.1} parent=5 // pred_check
        %p1113 = pneg %p1112
      $region124: #{conv2d_block.1} parent=5 // pred_check_branch
        %1115 = sbr.rel (%p1113) target = $region126
      $region125: #{conv2d_block.1} parent=5 // pred_region
        %s1116 = ssub.s32 %s10, 2
        // Predicated region
        $region127: #{conv2d_block.1} parent=125 // pred_check
          %p1117 = pneg %p153
        $region128: #{conv2d_block.1} parent=125 // pred_check_branch
          %1119 = sbr.rel (%p1117) target = $region130
        $region129: #{conv2d_block.1} parent=125 // pred_region
          %p1120 = scmp.lt.s32.totalorder %s21, 1
          %s1121 = scalar_select %p1120, %s21, 1
          %p1122 = scmp.lt.s32.totalorder %s22, 0
          %s1123 = scalar_select %p1122, %s22, 0
          %s1124 = sadd.s32 %s1123, %s1121
          %s1125 = smul.addr %s1124, 4
          %s1126 = scalar_lea.vmem %s4, %s1125
        $region130: #{conv2d_block.1} parent=125 // pred_fallthru
          _
      $region126: #{conv2d_block.1} parent=5 // pred_fallthru
        _
    $region6: #{conv2d_block.1} parent=1 // loop_footer
      %s14 = sadd.s32 1, %s10
    $region7: #{conv2d_block.1} parent=1 // loop_footer_branch
      %9 = sbr.rel target = $region3
    $region8: #{conv2d_block.1} parent=1 // loop_exit
      _

</llo_original>
